<compile_context>
chip_gen: v7x
topology: tpu7x:2x2x1
jax: 0.10.0
libtpu: 0.0.40
codegen_flags: <defaults>
</compile_context>

<pallas_src>
import math

import numpy as np
import jax
import jax.numpy as jnp
from jax.experimental import pallas as pl
from jax.experimental.pallas import tpu as pltpu


def calc_conv_out_dim(in_dim, kernel, stride):
    out_dim = in_dim - (kernel - 1) - 1
    out_dim = 1.0 * out_dim / stride
    return math.floor(out_dim + 1)


def _round_up(v, m):
    return ((v + m - 1) // m) * m


def _pick_bb(batch, max_bb=8):
    """Batch rows per grid step.  Keep >= 2 grid steps so dimension_semantics=('parallel',)
    can shard the grid across both TensorCores on v7x."""
    if batch <= 1:
        return 1
    cap = min(max_bb, batch // 2)
    for bb in range(cap, 0, -1):
        if batch % bb == 0:
            return bb
    return 1


# ------------------------------ fused Pallas kernel ------------------------------

def _make_kernel(metas, rows_in, n, bb, h0, tau):
    """Fused kernel body for one batch-block (G = bb*n images stacked along rows).

    Ref order: x, then per layer (G, bias), wbig, q2, fc_b, gumbel_noise, out.
    `metas` holds only static per-layer metadata (k, tap_step, has_act).
    """
    inv_tau = 1.0 / float(tau)
    rows_per_b = n * h0

    def kernel(*refs):
        it = iter(refs)
        x_ref = next(it)
        layer_refs = [(next(it), next(it)) for _ in metas]
        wbig_ref = next(it)
        q2_ref = next(it)
        fcb_ref = next(it)
        gn_ref = next(it)
        o_ref = next(it)

        # ---- conv + BN + ReLU6 chain; all bb*n images stacked along the M dim ----
        cur = None                 # bf16 activation slab of the previous layer
        last = None                # f32 output of the final conv layer
        rows = rows_in
        for meta, (g_ref, b_ref) in zip(metas, layer_refs):
            step = meta['tap_step']                    # row spacing of the input layer
            rows = rows - (meta['k'] - 1) * step
            acc = None
            for i in range(meta['k']):                 # one large-M matmul per H-tap
                off = i * step
                if cur is None:
                    band = x_ref[pl.ds(off, rows), :]
                else:
                    band = cur[off:off + rows, :]
                part = jnp.dot(band, g_ref[i], preferred_element_type=jnp.float32)
                acc = part if acc is None else acc + part
            y = acc + b_ref[...]                       # folded conv-bias + BN affine
            if meta['has_act']:
                y = jnp.clip(y, 0.0, 6.0)              # ReLU6
            last = y
            cur = y.astype(jnp.bfloat16)

        # ---- FC(feat -> 1): stride/garbage-row selection + lane weights folded in wbig ----
        tmp = last * wbig_ref[...]                         # (rows, lanes) f32
        rowsum = jnp.sum(tmp, axis=1, keepdims=True)       # (rows, 1) one cross-lane reduce
        scaled = rowsum * q2_ref[...]                      # (rows, n) candidate lane mask
        parts = []
        for b in range(bb):                                # per-batch-row block sums
            lo = b * rows_per_b
            hi = min(lo + rows_per_b, rows)
            parts.append(jnp.sum(scaled[lo:hi, :], axis=0, keepdims=True))
        logits = parts[0] if bb == 1 else jnp.concatenate(parts, axis=0)
        logits = logits + fcb_ref[...]                     # (bb, n)

        # ---- gumbel softmax (soft) over the n candidates of each batch row ----
        z = (logits + gn_ref[0]) * inv_tau
        z = z - jnp.max(z, axis=1, keepdims=True)
        e = jnp.exp(z)
        o_ref[0] = e / jnp.sum(e, axis=1, keepdims=True)

    return kernel


# ------------------------------------ module ------------------------------------

class ScLayerPallas:
    def __init__(self, cfg, input_size, key, eps=1e-5):
        c, h, w = input_size
        self.in_c, self.in_h, self.in_w = c, h, w
        self.layers = []      # per-layer device constants (G, bias)
        self.metas = []       # per-layer static metadata for the kernel body

        lane_in = _round_up(w * c, 128)
        self.lane_in0 = lane_in
        a = 1                                    # product of strides so far (row spacing)

        for (cin, cout, k, stride, act) in cfg:
            assert cin == c, "cfg channel chain mismatch"
            oh = calc_conv_out_dim(h, k, stride)
            ow = calc_conv_out_dim(w, k, stride)
            lane_out = _round_up(ow * cout, 128)

            key, k1, k2, k3, k4 = jax.random.split(key, 5)
            fan_in = cin * k * k
            bound = 1.0 / math.sqrt(fan_in)
            w_conv = jax.random.uniform(k1, (cout, cin, k, k), jnp.float32, -bound, bound)
            b_conv = jax.random.uniform(k2, (cout,), jnp.float32, -bound, bound)
            gamma = 1.0 + 0.1 * jax.random.normal(k3, (cout,), jnp.float32)
            beta = 0.1 * jax.random.normal(k4, (cout,), jnp.float32)
            running_mean = jnp.zeros((cout,), jnp.float32)
            running_var = jnp.ones((cout,), jnp.float32)
            # TODO(synk): BatchNorm folded in eval mode (running stats); training-mode batch
            # statistics would need an extra in-kernel reduction pass.
            scale = gamma / jnp.sqrt(running_var + eps)
            beff = (b_conv - running_mean) * scale + beta
            wfold = np.asarray(w_conv * scale[:, None, None, None])   # (cout, cin, k, k)

            # Fold the kernel-width taps + W-stride (+ BN scale) into one dense matrix per
            # H-tap:  G[i][w*Cin+ci, ow*Cout+co] = W[co,ci,i, w - stride*ow] (0 <= . < k).
            g = np.zeros((k, lane_in, lane_out), np.float32)
            for i in range(k):
                for j in range(k):
                    blk = wfold[:, :, i, j].T                          # (cin, cout)
                    for owi in range(ow):
                        wi = stride * owi + j
                        g[i, wi * cin:(wi + 1) * cin,
                          owi * cout:(owi + 1) * cout] = blk
            # TODO(synk): w*cin < 128 leaves structural zero K-lanes in layer-1's G; packing
            # two H-taps per 128-lane K row (K=256 on v6e/v7x) would remove them.
            bias_vec = np.zeros((1, lane_out), np.float32)
            bias_vec[0, :ow * cout] = np.tile(np.asarray(beff), ow)

            self.layers.append(dict(
                g=jnp.asarray(g, dtype=jnp.bfloat16),
                bias=jnp.asarray(bias_vec, dtype=jnp.float32)))
            self.metas.append(dict(k=k, tap_step=a, has_act=(act == 'relu6')))
            a *= stride
            c, h, w = cout, oh, ow
            lane_in = lane_out

        self.a_last = a                                  # row spacing of the last layer
        self.total_shrink = sum((m['k'] - 1) * m['tap_step'] for m in self.metas)
        self.out_c, self.out_h, self.out_w = c, h, w
        self.lane_last = lane_in

        feat = c * h * w
        key, k1, k2 = jax.random.split(key, 3)
        bound = 1.0 / math.sqrt(feat)
        fc_w = jax.random.uniform(k1, (1, feat), jnp.float32, -bound, bound)
        fc_b = jax.random.uniform(k2, (1,), jnp.float32, -bound, bound)
        # Permute the FC weight from PyTorch's (C,H,W) flatten order into the kernel's
        # lane-dense (H, W*C) layout so no feature-map transpose is needed at runtime.
        wfc = np.asarray(fc_w).reshape(c, h, w).transpose(1, 2, 0).reshape(h, w * c)
        wfc_pad = np.zeros((h, self.lane_last), np.float32)
        wfc_pad[:, :w * c] = wfc
        self.wfc_pad = wfc_pad
        self.fcb = jnp.asarray(np.asarray(fc_b).reshape(1, 1))
        self._const_cache = {}

    def _block_consts(self, bb, n):
        """Per-block constants (depend only on bb, n): Wbig (FC weights placed at the valid
        uncompacted rows, zero elsewhere) and the per-candidate 0/1 lane mask q2."""
        ck = (bb, n)
        if ck in self._const_cache:
            return self._const_cache[ck]
        h0 = self.in_h
        g_imgs = bb * n
        rows = g_imgs * h0 - self.total_shrink
        wbig = np.zeros((rows, self.lane_last), np.float32)
        sel_rows = (np.arange(g_imgs)[:, None] * h0
                    + self.a_last * np.arange(self.out_h)[None, :]).reshape(-1)
        wbig[sel_rows] = np.tile(self.wfc_pad, (g_imgs, 1))
        img_of_row = np.arange(rows) // h0
        q2 = (img_of_row[:, None] % n == np.arange(n)[None, :]).astype(np.float32)
        consts = (jnp.asarray(wbig), jnp.asarray(q2))
        self._const_cache[ck] = consts
        return consts

    def __call__(self, x, gumbel_key, tau=1.0):
        # x: (batch, n, C, H, W)  -- PyTorch NCHW convention at the boundary.
        batch, n, cc, hh, ww = x.shape
        assert (cc, hh, ww) == (self.in_c, self.in_h, self.in_w)

        bb = _pick_bb(batch)                 # batch rows per grid step
        nblk = batch // bb
        rows_blk = bb * n * hh
        assert rows_blk % 8 == 0, "row block must be a multiple of 8 sublanes"

        # NCHW -> lane-dense 2-D slab: rows = (batch, n, h), lanes = (w, c); pad lanes to 128.
        x2d = jnp.transpose(x, (0, 1, 3, 4, 2)).reshape(batch * n * hh, ww * cc)
        if self.lane_in0 > ww * cc:
            x2d = jnp.pad(x2d, ((0, 0), (0, self.lane_in0 - ww * cc)))
        x2d = x2d.astype(jnp.bfloat16)

        wbig, q2 = self._block_consts(bb, n)

        # TODO(synk): gumbel noise sampled with jax.random (host-side glue); could be moved
        # in-kernel with pltpu.prng_seed/prng_random_bits to drop this input entirely.
        gnoise = jax.random.gumbel(gumbel_key, (nblk, bb, n), jnp.float32)

        inputs = [x2d]
        in_specs = [pl.BlockSpec((rows_blk, self.lane_in0), lambda i: (i, 0))]
        for lyr in self.layers:
            inputs.append(lyr['g'])
            in_specs.append(pl.BlockSpec(lyr['g'].shape, lambda i: (0, 0, 0)))
            inputs.append(lyr['bias'])
            in_specs.append(pl.BlockSpec(lyr['bias'].shape, lambda i: (0, 0)))
        inputs += [wbig, q2, self.fcb, gnoise]
        in_specs += [pl.BlockSpec(wbig.shape, lambda i: (0, 0)),
                     pl.BlockSpec(q2.shape, lambda i: (0, 0)),
                     pl.BlockSpec(self.fcb.shape, lambda i: (0, 0)),
                     pl.BlockSpec((1, bb, n), lambda i: (i, 0, 0))]

        out = pl.pallas_call(
            _make_kernel(self.metas, rows_blk, n, bb, hh, tau),
            out_shape=jax.ShapeDtypeStruct((nblk, bb, n), jnp.float32),
            grid_spec=pltpu.PrefetchScalarGridSpec(
                num_scalar_prefetch=0,
                grid=(nblk,),
                in_specs=in_specs,
                out_specs=pl.BlockSpec((1, bb, n), lambda i: (i, 0, 0))),
            compiler_params=pltpu.CompilerParams(
                dimension_semantics=("parallel",),
                vmem_limit_bytes=32 * 1024 * 1024),
        )(*inputs)
        return out.reshape(batch, n)        # rows sum to 1 (soft gumbel-softmax)


if __name__ == "__main__":
    key = jax.random.PRNGKey(0)
    key, pkey, xkey, gkey = jax.random.split(key, 4)

    # cfg entries: (in_ch, out_ch, kernel, stride, activation)
    cfg = [(4, 8, 3, 1, 'relu6'), (8, 16, 3, 2, 'relu6')]
    input_size = (4, 16, 16)                                   # (C, H, W)
    model = ScLayerPallas(cfg, input_size, pkey)

    x = jax.random.normal(xkey, (2, 4, 4, 16, 16), jnp.float32)  # (batch, n, C, H, W)
    out = model(x, gkey)
    out = jax.block_until_ready(out)

    assert out.shape == (2, 4)
    assert bool(jnp.all(jnp.isfinite(out)))
    row_sums = jnp.sum(out, axis=1)
    assert bool(jnp.all(jnp.abs(row_sums - 1.0) < 1e-4))
    print("KERNEL_OK")
</pallas_src>

<mosaic_0001>
module attributes {stable_mosaic.version = 11 : i64} {
  func.func @kernel(%arg0: i32, %arg1: memref<64x128xbf16, #tpu.memory_space<vmem>>, %arg2: memref<3x128x128xbf16, #tpu.memory_space<vmem>>, %arg3: memref<1x128xf32, #tpu.memory_space<vmem>>, %arg4: memref<3x128x128xbf16, #tpu.memory_space<vmem>>, %arg5: memref<1x128xf32, #tpu.memory_space<vmem>>, %arg6: memref<60x128xf32, #tpu.memory_space<vmem>>, %arg7: memref<60x4xf32, #tpu.memory_space<vmem>>, %arg8: memref<1x1xf32, #tpu.memory_space<vmem>>, %arg9: memref<1x1x4xf32, #tpu.memory_space<vmem>>, %arg10: memref<1x1x4xf32, #tpu.memory_space<vmem>>) attributes {dimension_semantics = [#tpu.dimension_semantics<parallel>], iteration_bounds = array<i64: 2>, scalar_prefetch = 0 : i64, scratch_operands = 0 : i64, tpu.core_type = #tpu.core_type<tc>, window_params = [{transform_indices = @transform_0, window_bounds = array<i64: 64, 128>}, {pipeline_mode = #tpu.pipeline_mode<synchronous>, transform_indices = @transform_1, window_bounds = array<i64: 3, 128, 128>}, {pipeline_mode = #tpu.pipeline_mode<synchronous>, transform_indices = @transform_2, window_bounds = array<i64: 1, 128>}, {pipeline_mode = #tpu.pipeline_mode<synchronous>, transform_indices = @transform_3, window_bounds = array<i64: 3, 128, 128>}, {pipeline_mode = #tpu.pipeline_mode<synchronous>, transform_indices = @transform_4, window_bounds = array<i64: 1, 128>}, {pipeline_mode = #tpu.pipeline_mode<synchronous>, transform_indices = @transform_5, window_bounds = array<i64: 60, 128>}, {pipeline_mode = #tpu.pipeline_mode<synchronous>, transform_indices = @transform_6, window_bounds = array<i64: 60, 4>}, {pipeline_mode = #tpu.pipeline_mode<synchronous>, transform_indices = @transform_7, window_bounds = array<i64: 1, 1>}, {transform_indices = @transform_8, window_bounds = array<i64: 1, 1, 4>}, {transform_indices = @transform_9, window_bounds = array<i64: 1, 1, 4>}]} {
    %c0 = arith.constant 0 : index
    %c0_0 = arith.constant 0 : index
    %0 = vector.load %arg1[%c0, %c0_0] : memref<64x128xbf16, #tpu.memory_space<vmem>>, vector<62x128xbf16>
    %c0_1 = arith.constant 0 : index
    %c0_2 = arith.constant 0 : index
    %c0_3 = arith.constant 0 : index
    %1 = vector.load %arg2[%c0_1, %c0_2, %c0_3] : memref<3x128x128xbf16, #tpu.memory_space<vmem>>, vector<1x128x128xbf16>
    %2 = vector.shape_cast %1 : vector<1x128x128xbf16> to vector<128x128xbf16>
    %cst = arith.constant dense<0.000000e+00> : vector<62x128xf32>
    %3 = tpu.matmul %0, %2, %cst {dimension_numbers = #tpu.dot_dimension_numbers<[1], [0], [0], [1], [0, 0, 1, 1], [], []>} : vector<62x128xbf16>, vector<128x128xbf16>, vector<62x128xf32> -> vector<62x128xf32>
    %c1 = arith.constant 1 : index
    %c0_4 = arith.constant 0 : index
    %4 = vector.load %arg1[%c1, %c0_4] : memref<64x128xbf16, #tpu.memory_space<vmem>>, vector<62x128xbf16>
    %c1_5 = arith.constant 1 : index
    %c0_6 = arith.constant 0 : index
    %c0_7 = arith.constant 0 : index
    %5 = vector.load %arg2[%c1_5, %c0_6, %c0_7] : memref<3x128x128xbf16, #tpu.memory_space<vmem>>, vector<1x128x128xbf16>
    %6 = vector.shape_cast %5 : vector<1x128x128xbf16> to vector<128x128xbf16>
    %cst_8 = arith.constant dense<0.000000e+00> : vector<62x128xf32>
    %7 = tpu.matmul %4, %6, %cst_8 {dimension_numbers = #tpu.dot_dimension_numbers<[1], [0], [0], [1], [0, 0, 1, 1], [], []>} : vector<62x128xbf16>, vector<128x128xbf16>, vector<62x128xf32> -> vector<62x128xf32>
    %8 = arith.addf %3, %7 : vector<62x128xf32>
    %c2 = arith.constant 2 : index
    %c0_9 = arith.constant 0 : index
    %9 = vector.load %arg1[%c2, %c0_9] : memref<64x128xbf16, #tpu.memory_space<vmem>>, vector<62x128xbf16>
    %c2_10 = arith.constant 2 : index
    %c0_11 = arith.constant 0 : index
    %c0_12 = arith.constant 0 : index
    %10 = vector.load %arg2[%c2_10, %c0_11, %c0_12] : memref<3x128x128xbf16, #tpu.memory_space<vmem>>, vector<1x128x128xbf16>
    %11 = vector.shape_cast %10 : vector<1x128x128xbf16> to vector<128x128xbf16>
    %cst_13 = arith.constant dense<0.000000e+00> : vector<62x128xf32>
    %12 = tpu.matmul %9, %11, %cst_13 {dimension_numbers = #tpu.dot_dimension_numbers<[1], [0], [0], [1], [0, 0, 1, 1], [], []>} : vector<62x128xbf16>, vector<128x128xbf16>, vector<62x128xf32> -> vector<62x128xf32>
    %13 = arith.addf %8, %12 : vector<62x128xf32>
    %c0_14 = arith.constant 0 : index
    %c0_15 = arith.constant 0 : index
    %14 = vector.load %arg3[%c0_14, %c0_15] : memref<1x128xf32, #tpu.memory_space<vmem>>, vector<1x128xf32>
    %15 = vector.broadcast %14 : vector<1x128xf32> to vector<62x128xf32>
    %16 = arith.addf %13, %15 : vector<62x128xf32>
    %cst_16 = arith.constant 0.000000e+00 : f32
    %cst_17 = arith.constant 6.000000e+00 : f32
    %17 = vector.broadcast %cst_16 : f32 to vector<62x128xf32>
    %18 = arith.maximumf %17, %16 : vector<62x128xf32>
    %19 = vector.broadcast %cst_17 : f32 to vector<62x128xf32>
    %20 = arith.minimumf %19, %18 : vector<62x128xf32>
    %21 = arith.truncf %20 : vector<62x128xf32> to vector<62x128xbf16>
    %22 = vector.extract_strided_slice %21 {offsets = [0, 0], sizes = [60, 128], strides = [1, 1]} : vector<62x128xbf16> to vector<60x128xbf16>
    %c0_18 = arith.constant 0 : index
    %c0_19 = arith.constant 0 : index
    %c0_20 = arith.constant 0 : index
    %23 = vector.load %arg4[%c0_18, %c0_19, %c0_20] : memref<3x128x128xbf16, #tpu.memory_space<vmem>>, vector<1x128x128xbf16>
    %24 = vector.shape_cast %23 : vector<1x128x128xbf16> to vector<128x128xbf16>
    %cst_21 = arith.constant dense<0.000000e+00> : vector<60x128xf32>
    %25 = tpu.matmul %22, %24, %cst_21 {dimension_numbers = #tpu.dot_dimension_numbers<[1], [0], [0], [1], [0, 0, 1, 1], [], []>} : vector<60x128xbf16>, vector<128x128xbf16>, vector<60x128xf32> -> vector<60x128xf32>
    %26 = vector.extract_strided_slice %21 {offsets = [1, 0], sizes = [60, 128], strides = [1, 1]} : vector<62x128xbf16> to vector<60x128xbf16>
    %c1_22 = arith.constant 1 : index
    %c0_23 = arith.constant 0 : index
    %c0_24 = arith.constant 0 : index
    %27 = vector.load %arg4[%c1_22, %c0_23, %c0_24] : memref<3x128x128xbf16, #tpu.memory_space<vmem>>, vector<1x128x128xbf16>
    %28 = vector.shape_cast %27 : vector<1x128x128xbf16> to vector<128x128xbf16>
    %cst_25 = arith.constant dense<0.000000e+00> : vector<60x128xf32>
    %29 = tpu.matmul %26, %28, %cst_25 {dimension_numbers = #tpu.dot_dimension_numbers<[1], [0], [0], [1], [0, 0, 1, 1], [], []>} : vector<60x128xbf16>, vector<128x128xbf16>, vector<60x128xf32> -> vector<60x128xf32>
    %30 = arith.addf %25, %29 : vector<60x128xf32>
    %31 = vector.extract_strided_slice %21 {offsets = [2, 0], sizes = [60, 128], strides = [1, 1]} : vector<62x128xbf16> to vector<60x128xbf16>
    %c2_26 = arith.constant 2 : index
    %c0_27 = arith.constant 0 : index
    %c0_28 = arith.constant 0 : index
    %32 = vector.load %arg4[%c2_26, %c0_27, %c0_28] : memref<3x128x128xbf16, #tpu.memory_space<vmem>>, vector<1x128x128xbf16>
    %33 = vector.shape_cast %32 : vector<1x128x128xbf16> to vector<128x128xbf16>
    %cst_29 = arith.constant dense<0.000000e+00> : vector<60x128xf32>
    %34 = tpu.matmul %31, %33, %cst_29 {dimension_numbers = #tpu.dot_dimension_numbers<[1], [0], [0], [1], [0, 0, 1, 1], [], []>} : vector<60x128xbf16>, vector<128x128xbf16>, vector<60x128xf32> -> vector<60x128xf32>
    %35 = arith.addf %30, %34 : vector<60x128xf32>
    %c0_30 = arith.constant 0 : index
    %c0_31 = arith.constant 0 : index
    %36 = vector.load %arg5[%c0_30, %c0_31] : memref<1x128xf32, #tpu.memory_space<vmem>>, vector<1x128xf32>
    %37 = vector.broadcast %36 : vector<1x128xf32> to vector<60x128xf32>
    %38 = arith.addf %35, %37 : vector<60x128xf32>
    %cst_32 = arith.constant 0.000000e+00 : f32
    %cst_33 = arith.constant 6.000000e+00 : f32
    %39 = vector.broadcast %cst_32 : f32 to vector<60x128xf32>
    %40 = arith.maximumf %39, %38 : vector<60x128xf32>
    %41 = vector.broadcast %cst_33 : f32 to vector<60x128xf32>
    %42 = arith.minimumf %41, %40 : vector<60x128xf32>
    %c0_34 = arith.constant 0 : index
    %c0_35 = arith.constant 0 : index
    %43 = vector.load %arg6[%c0_34, %c0_35] : memref<60x128xf32, #tpu.memory_space<vmem>>, vector<60x128xf32>
    %44 = arith.mulf %42, %43 : vector<60x128xf32>
    %cst_36 = arith.constant dense<0.000000e+00> : vector<60xf32>
    %45 = vector.multi_reduction <add>, %44, %cst_36 [1] : vector<60x128xf32> to vector<60xf32>
    %46 = vector.shape_cast %45 : vector<60xf32> to vector<60x1xf32>
    %c0_37 = arith.constant 0 : index
    %c0_38 = arith.constant 0 : index
    %47 = vector.load %arg7[%c0_37, %c0_38] : memref<60x4xf32, #tpu.memory_space<vmem>>, vector<60x4xf32>
    %48 = vector.broadcast %46 : vector<60x1xf32> to vector<60x4xf32>
    %49 = arith.mulf %48, %47 : vector<60x4xf32>
    %cst_39 = arith.constant dense<0.000000e+00> : vector<4xf32>
    %50 = vector.multi_reduction <add>, %49, %cst_39 [0] : vector<60x4xf32> to vector<4xf32>
    %51 = vector.shape_cast %50 : vector<4xf32> to vector<1x4xf32>
    %c0_40 = arith.constant 0 : index
    %c0_41 = arith.constant 0 : index
    %52 = vector.load %arg8[%c0_40, %c0_41] : memref<1x1xf32, #tpu.memory_space<vmem>>, vector<1x1xf32>
    %53 = vector.broadcast %52 : vector<1x1xf32> to vector<1x4xf32>
    %54 = arith.addf %51, %53 : vector<1x4xf32>
    %c0_42 = arith.constant 0 : index
    %c0_43 = arith.constant 0 : index
    %c0_44 = arith.constant 0 : index
    %55 = vector.load %arg9[%c0_42, %c0_43, %c0_44] : memref<1x1x4xf32, #tpu.memory_space<vmem>>, vector<1x1x4xf32>
    %56 = vector.shape_cast %55 : vector<1x1x4xf32> to vector<1x4xf32>
    %57 = arith.addf %54, %56 : vector<1x4xf32>
    %cst_45 = arith.constant 1.000000e+00 : f32
    %58 = vector.broadcast %cst_45 : f32 to vector<1x4xf32>
    %59 = arith.mulf %57, %58 : vector<1x4xf32>
    %cst_46 = arith.constant dense<0xFF800000> : vector<1xf32>
    %60 = vector.multi_reduction <maximumf>, %59, %cst_46 [1] : vector<1x4xf32> to vector<1xf32>
    %61 = vector.shape_cast %60 : vector<1xf32> to vector<1x1xf32>
    %62 = vector.broadcast %61 : vector<1x1xf32> to vector<1x4xf32>
    %63 = arith.subf %59, %62 : vector<1x4xf32>
    %64 = math.exp %63 : vector<1x4xf32>
    %cst_47 = arith.constant dense<0.000000e+00> : vector<1xf32>
    %65 = vector.multi_reduction <add>, %64, %cst_47 [1] : vector<1x4xf32> to vector<1xf32>
    %66 = vector.shape_cast %65 : vector<1xf32> to vector<1x1xf32>
    %67 = vector.broadcast %66 : vector<1x1xf32> to vector<1x4xf32>
    %68 = arith.divf %64, %67 : vector<1x4xf32>
    %c0_48 = arith.constant 0 : index
    %c0_49 = arith.constant 0 : index
    %c0_50 = arith.constant 0 : index
    %69 = vector.load %arg10[%c0_48, %c0_49, %c0_50] : memref<1x1x4xf32, #tpu.memory_space<vmem>>, vector<1x1x4xf32>
    %70 = vector.shape_cast %69 : vector<1x1x4xf32> to vector<1x4xf32>
    %71 = vector.shape_cast %68 : vector<1x4xf32> to vector<1x1x4xf32>
    tpu.vector_store %arg10[%c0_48, %c0_49, %c0_50], %71 {strides = array<i32>} : memref<1x1x4xf32, #tpu.memory_space<vmem>>, vector<1x1x4xf32>,
    return
  }
  func.func @transform_0(%arg0: i32) -> (i32, i32) {
    %c0_i32 = arith.constant 0 : i32
    %c0_i32_0 = arith.constant 0 : i32
    return %arg0, %c0_i32 : i32, i32
  }
  func.func @transform_1(%arg0: i32) -> (i32, i32, i32) {
    %c0_i32 = arith.constant 0 : i32
    %c0_i32_0 = arith.constant 0 : i32
    %c0_i32_1 = arith.constant 0 : i32
    %c0_i32_2 = arith.constant 0 : i32
    return %c0_i32, %c0_i32_0, %c0_i32_1 : i32, i32, i32
  }
  func.func @transform_2(%arg0: i32) -> (i32, i32) {
    %c0_i32 = arith.constant 0 : i32
    %c0_i32_0 = arith.constant 0 : i32
    %c0_i32_1 = arith.constant 0 : i32
    return %c0_i32, %c0_i32_0 : i32, i32
  }
  func.func @transform_3(%arg0: i32) -> (i32, i32, i32) {
    %c0_i32 = arith.constant 0 : i32
    %c0_i32_0 = arith.constant 0 : i32
    %c0_i32_1 = arith.constant 0 : i32
    %c0_i32_2 = arith.constant 0 : i32
    return %c0_i32, %c0_i32_0, %c0_i32_1 : i32, i32, i32
  }
  func.func @transform_4(%arg0: i32) -> (i32, i32) {
    %c0_i32 = arith.constant 0 : i32
    %c0_i32_0 = arith.constant 0 : i32
    %c0_i32_1 = arith.constant 0 : i32
    return %c0_i32, %c0_i32_0 : i32, i32
  }
  func.func @transform_5(%arg0: i32) -> (i32, i32) {
    %c0_i32 = arith.constant 0 : i32
    %c0_i32_0 = arith.constant 0 : i32
    %c0_i32_1 = arith.constant 0 : i32
    return %c0_i32, %c0_i32_0 : i32, i32
  }
  func.func @transform_6(%arg0: i32) -> (i32, i32) {
    %c0_i32 = arith.constant 0 : i32
    %c0_i32_0 = arith.constant 0 : i32
    %c0_i32_1 = arith.constant 0 : i32
    return %c0_i32, %c0_i32_0 : i32, i32
  }
  func.func @transform_7(%arg0: i32) -> (i32, i32) {
    %c0_i32 = arith.constant 0 : i32
    %c0_i32_0 = arith.constant 0 : i32
    %c0_i32_1 = arith.constant 0 : i32
    return %c0_i32, %c0_i32_0 : i32, i32
  }
  func.func @transform_8(%arg0: i32) -> (i32, i32, i32) {
    %c0_i32 = arith.constant 0 : i32
    %c0_i32_0 = arith.constant 0 : i32
    %c0_i32_1 = arith.constant 0 : i32
    return %arg0, %c0_i32, %c0_i32_0 : i32, i32, i32
  }
  func.func @transform_9(%arg0: i32) -> (i32, i32, i32) {
    %c0_i32 = arith.constant 0 : i32
    %c0_i32_0 = arith.constant 0 : i32
    %c0_i32_1 = arith.constant 0 : i32
    return %arg0, %c0_i32, %c0_i32_0 : i32, i32, i32
  }
}

</mosaic_0001>

<llo_original>
// kernel: tpu_custom_call.1
$region0: #{tpu_custom_call.1}
  #allocation0 [shape = 'u32[]', space=smem, size = 0x4, offset = 0x4, fixed_abs, tag = 'smem constant byte address 0x4 - core index']
  #allocation1 [shape = 'u32[144,128]{1,0:T(1,128)}', space=vmem, size = 0x12000, scoped, tag = 'internal scratch']
  #allocation2 [shape = 'f32[1,1]{1,0:T(1,128)S(1)}', space=vmem, size = 0x200, scoped, tag = 'scoped memory for tpu_custom_call.1']
  %s0 = inlined_call_operand.vmem [shape: bf16[128,128], index: 0, kind: input, shape index: {}]
  %s1 = inlined_call_operand.hbm [shape: bf16[3,128,128], index: 1, kind: input, shape index: {}]
  %s2 = inlined_call_operand.vmem [shape: f32[1,128], index: 2, kind: input, shape index: {}]
  %s3 = inlined_call_operand.hbm [shape: bf16[3,128,128], index: 3, kind: input, shape index: {}]
  %s4 = inlined_call_operand.vmem [shape: f32[1,128], index: 4, kind: input, shape index: {}]
  %s5 = inlined_call_operand.hbm [shape: f32[60,128], index: 5, kind: input, shape index: {}]
  %s6 = inlined_call_operand.vmem [shape: f32[60,4], index: 6, kind: input, shape index: {}]
  %s7 = inlined_call_operand.<no memory space> [shape: f32[1,1], index: 7, kind: input, shape index: {}]
  %s8 = inlined_call_operand.vmem [shape: f32[2,1,4], index: 8, kind: input, shape index: {}]
  %s9 = inlined_call_operand.hbm [shape: f32[2,1,4], index: 9, kind: output, shape index: {}]
  %s10 = sld [smem:[#allocation0]]
  $region81: #{tpu_custom_call.1} parent=0
    _
  %s12 = ssub.s32 1, %s10
  %s13 = scalar_select 0, %s12, %s10
  %v14 = vstv %s7
  %15 = vst [vmem:[#allocation2] sm:$0x1] %v14
  $region1: #{tpu_custom_call.1} parent=0
    #allocation3 [shape = 'u8[98304]{0}', space=vmem, size = 0x18000, scoped, tag = 'input window, operand 1, single buffered']
    #allocation4 [shape = 's32[2]{0}', space=sflag, size = 0x8, scoped, tag = 'scoped memory for tpu_custom_call.1']
    #allocation5 [shape = 's32[2]{0}', space=sflag, size = 0x8, scoped, tag = 'scoped memory for tpu_custom_call.1']
    #allocation6 [shape = 'u8[98304]{0}', space=vmem, size = 0x18000, scoped, tag = 'input window, operand 3, single buffered']
    #allocation7 [shape = 's32[1]{0}', space=sflag, size = 0x4, scoped, tag = 'scoped memory for tpu_custom_call.1']
    #allocation8 [shape = 'u8[32768]{0}', space=vmem, size = 0x8000, scoped, tag = 'input window, operand 5, single buffered']
    #allocation9 [shape = 'u8[1024]{0}', space=vmem, size = 0x400, scoped, tag = 'output window, operand 0']
    %16 = vsyncpa [#allocation4], 0
    %17 = vsyncpa [#allocation7], 0
    %18 = vsyncpa [#allocation5], 0
    %s19 = scalar_lea.sflag [#allocation5], 1
    %20 = vsyncpa %s19, 0
    loop: start=0, step=1, limit=4
    $region2: #{tpu_custom_call.1} parent=1 // loop_pre_header
      _
    $region3: #{tpu_custom_call.1} parent=1 // loop_header
      %s22 = sphi 0, %s26
      %p23 = scmp.ge.s32.totalorder %s22, 4
      %s32 = sphi 0, %s34
      %s35 = sphi 0, %s32
      %s36 = sphi 0, %s35
      %s52 = sphi 0, %s36
      %s56 = sphi 0, %s56
      %s58 = sphi 0, %s56
      %s59 = sphi 0, %s58
      %s73 = sphi 0, %s59
      %s77 = sphi 0, %s77
      %s79 = sphi 0, %s77
      %s80 = sphi 0, %s79
      %s94 = sphi 0, %s80
      %s98 = sphi 0, %s98
      %s100 = sphi 0, %s98
      %s101 = sphi 0, %s100
      %s115 = sphi 0, %s101
      %s119 = sphi 0, %s119
      %s121 = sphi 0, %s119
      %s122 = sphi 0, %s121
      %s136 = sphi 0, %s122
      %s140 = sphi 0, %s140
      %s142 = sphi 0, %s140
      %s143 = sphi 0, %s142
      %s157 = sphi 0, %s143
      %s161 = sphi 0, %s161
      %s163 = sphi 0, %s161
      %s164 = sphi 0, %s163
      %s178 = sphi 0, %s164
      %s182 = sphi 0, %s182
      %s184 = sphi 0, %s182
      %s185 = sphi 0, %s184
      %s199 = sphi 0, %s185
      %s205 = sphi 0, %s207
      %s208 = sphi 0, %s205
      %s209 = sphi 0, %s208
      %s225 = sphi 0, %s209
      %s231 = sphi 0, %s233
      %s234 = sphi 0, %s231
      %s235 = sphi 0, %s234
      %s251 = sphi 0, %s235
    $region4: #{tpu_custom_call.1} parent=1 // loop_header_branch
      %25 = sbr.rel (%p23) target = $region8
    $region5: #{tpu_custom_call.1} parent=1 // loop_body
      %s27 = ssub.s32 %s22, 1
      %s28 = ssub.s32 %s22, 2
      %s29 = sadd.s32 %s22, 1
      %s30 = ssub.s32 %s22, %s29
      %p31 = scmp.eq.s32.totalorder %s30, 0
      %s33 = sadd.s32 %s32, 1
      %s34 = scalar_select %p31, %s32, %s33
      %p37 = pneg %p31
      %p38 = scmp.eq.s32.totalorder %s22, 1
      %p39 = por %p37, %p38
      %p40 = scmp.ne.s32.totalorder %s32, %s35
      %p41 = scmp.eq.s32.totalorder %s22, 0
      %p42 = por %p40, %p41
      %p43 = scmp.ne.s32.totalorder %s32, %s35
      %p44 = scmp.eq.s32.totalorder %s27, 1
      %p45 = por %p43, %p44
      %p46 = scmp.ne.s32.totalorder %s35, %s36
      %p47 = scmp.eq.s32.totalorder %s27, 0
      %p48 = por %p46, %p47
      %p49 = scmp.ne.s32.totalorder %s35, %s36
      %p50 = scmp.eq.s32.totalorder %s28, 1
      %p51 = por %p49, %p50
      %p53 = scmp.ne.s32.totalorder %s36, %s52
      %p54 = scmp.eq.s32.totalorder %s28, 0
      %p55 = por %p53, %p54
      %s57 = sadd.s32 %s56, 1
      %p60 = scmp.eq.s32.totalorder %s22, 1
      %p61 = scmp.ne.s32.totalorder %s56, %s58
      %p62 = scmp.eq.s32.totalorder %s22, 0
      %p63 = por %p61, %p62
      %p64 = scmp.ne.s32.totalorder %s56, %s58
      %p65 = scmp.eq.s32.totalorder %s27, 1
      %p66 = por %p64, %p65
      %p67 = scmp.ne.s32.totalorder %s58, %s59
      %p68 = scmp.eq.s32.totalorder %s27, 0
      %p69 = por %p67, %p68
      %p70 = scmp.ne.s32.totalorder %s58, %s59
      %p71 = scmp.eq.s32.totalorder %s28, 1
      %p72 = por %p70, %p71
      %p74 = scmp.ne.s32.totalorder %s59, %s73
      %p75 = scmp.eq.s32.totalorder %s28, 0
      %p76 = por %p74, %p75
      %s78 = sadd.s32 %s77, 1
      %p81 = scmp.eq.s32.totalorder %s22, 1
      %p82 = scmp.ne.s32.totalorder %s77, %s79
      %p83 = scmp.eq.s32.totalorder %s22, 0
      %p84 = por %p82, %p83
      %p85 = scmp.ne.s32.totalorder %s77, %s79
      %p86 = scmp.eq.s32.totalorder %s27, 1
      %p87 = por %p85, %p86
      %p88 = scmp.ne.s32.totalorder %s79, %s80
      %p89 = scmp.eq.s32.totalorder %s27, 0
      %p90 = por %p88, %p89
      %p91 = scmp.ne.s32.totalorder %s79, %s80
      %p92 = scmp.eq.s32.totalorder %s28, 1
      %p93 = por %p91, %p92
      %p95 = scmp.ne.s32.totalorder %s80, %s94
      %p96 = scmp.eq.s32.totalorder %s28, 0
      %p97 = por %p95, %p96
      %s99 = sadd.s32 %s98, 1
      %p102 = scmp.eq.s32.totalorder %s22, 1
      %p103 = scmp.ne.s32.totalorder %s98, %s100
      %p104 = scmp.eq.s32.totalorder %s22, 0
      %p105 = por %p103, %p104
      %p106 = scmp.ne.s32.totalorder %s98, %s100
      %p107 = scmp.eq.s32.totalorder %s27, 1
      %p108 = por %p106, %p107
      %p109 = scmp.ne.s32.totalorder %s100, %s101
      %p110 = scmp.eq.s32.totalorder %s27, 0
      %p111 = por %p109, %p110
      %p112 = scmp.ne.s32.totalorder %s100, %s101
      %p113 = scmp.eq.s32.totalorder %s28, 1
      %p114 = por %p112, %p113
      %p116 = scmp.ne.s32.totalorder %s101, %s115
      %p117 = scmp.eq.s32.totalorder %s28, 0
      %p118 = por %p116, %p117
      %s120 = sadd.s32 %s119, 1
      %p123 = scmp.eq.s32.totalorder %s22, 1
      %p124 = scmp.ne.s32.totalorder %s119, %s121
      %p125 = scmp.eq.s32.totalorder %s22, 0
      %p126 = por %p124, %p125
      %p127 = scmp.ne.s32.totalorder %s119, %s121
      %p128 = scmp.eq.s32.totalorder %s27, 1
      %p129 = por %p127, %p128
      %p130 = scmp.ne.s32.totalorder %s121, %s122
      %p131 = scmp.eq.s32.totalorder %s27, 0
      %p132 = por %p130, %p131
      %p133 = scmp.ne.s32.totalorder %s121, %s122
      %p134 = scmp.eq.s32.totalorder %s28, 1
      %p135 = por %p133, %p134
      %p137 = scmp.ne.s32.totalorder %s122, %s136
      %p138 = scmp.eq.s32.totalorder %s28, 0
      %p139 = por %p137, %p138
      %s141 = sadd.s32 %s140, 1
      %p144 = scmp.eq.s32.totalorder %s22, 1
      %p145 = scmp.ne.s32.totalorder %s140, %s142
      %p146 = scmp.eq.s32.totalorder %s22, 0
      %p147 = por %p145, %p146
      %p148 = scmp.ne.s32.totalorder %s140, %s142
      %p149 = scmp.eq.s32.totalorder %s27, 1
      %p150 = por %p148, %p149
      %p151 = scmp.ne.s32.totalorder %s142, %s143
      %p152 = scmp.eq.s32.totalorder %s27, 0
      %p153 = por %p151, %p152
      %p154 = scmp.ne.s32.totalorder %s142, %s143
      %p155 = scmp.eq.s32.totalorder %s28, 1
      %p156 = por %p154, %p155
      %p158 = scmp.ne.s32.totalorder %s143, %s157
      %p159 = scmp.eq.s32.totalorder %s28, 0
      %p160 = por %p158, %p159
      %s162 = sadd.s32 %s161, 1
      %p165 = scmp.eq.s32.totalorder %s22, 1
      %p166 = scmp.ne.s32.totalorder %s161, %s163
      %p167 = scmp.eq.s32.totalorder %s22, 0
      %p168 = por %p166, %p167
      %p169 = scmp.ne.s32.totalorder %s161, %s163
      %p170 = scmp.eq.s32.totalorder %s27, 1
      %p171 = por %p169, %p170
      %p172 = scmp.ne.s32.totalorder %s163, %s164
      %p173 = scmp.eq.s32.totalorder %s27, 0
      %p174 = por %p172, %p173
      %p175 = scmp.ne.s32.totalorder %s163, %s164
      %p176 = scmp.eq.s32.totalorder %s28, 1
      %p177 = por %p175, %p176
      %p179 = scmp.ne.s32.totalorder %s164, %s178
      %p180 = scmp.eq.s32.totalorder %s28, 0
      %p181 = por %p179, %p180
      %s183 = sadd.s32 %s182, 1
      %p186 = scmp.eq.s32.totalorder %s22, 1
      %p187 = scmp.ne.s32.totalorder %s182, %s184
      %p188 = scmp.eq.s32.totalorder %s22, 0
      %p189 = por %p187, %p188
      %p190 = scmp.ne.s32.totalorder %s182, %s184
      %p191 = scmp.eq.s32.totalorder %s27, 1
      %p192 = por %p190, %p191
      %p193 = scmp.ne.s32.totalorder %s184, %s185
      %p194 = scmp.eq.s32.totalorder %s27, 0
      %p195 = por %p193, %p194
      %p196 = scmp.ne.s32.totalorder %s184, %s185
      %p197 = scmp.eq.s32.totalorder %s28, 1
      %p198 = por %p196, %p197
      %p200 = scmp.ne.s32.totalorder %s185, %s199
      %p201 = scmp.eq.s32.totalorder %s28, 0
      %p202 = por %p200, %p201
      %s203 = ssub.s32 %s22, %s29
      %p204 = scmp.eq.s32.totalorder %s203, 0
      %s206 = sadd.s32 %s205, 1
      %s207 = scalar_select %p204, %s205, %s206
      %p210 = pneg %p204
      %p211 = scmp.eq.s32.totalorder %s22, 1
      %p212 = por %p210, %p211
      %p213 = scmp.ne.s32.totalorder %s205, %s208
      %p214 = scmp.eq.s32.totalorder %s22, 0
      %p215 = por %p213, %p214
      %p216 = scmp.ne.s32.totalorder %s205, %s208
      %p217 = scmp.eq.s32.totalorder %s27, 1
      %p218 = por %p216, %p217
      %p219 = scmp.ne.s32.totalorder %s208, %s209
      %p220 = scmp.eq.s32.totalorder %s27, 0
      %p221 = por %p219, %p220
      %p222 = scmp.ne.s32.totalorder %s208, %s209
      %p223 = scmp.eq.s32.totalorder %s28, 1
      %p224 = por %p222, %p223
      %p226 = scmp.ne.s32.totalorder %s209, %s225
      %p227 = scmp.eq.s32.totalorder %s28, 0
      %p228 = por %p226, %p227
      %s229 = ssub.s32 %s22, %s29
      %p230 = scmp.eq.s32.totalorder %s229, 0
      %s232 = sadd.s32 %s231, 1
      %s233 = scalar_select %p230, %s231, %s232
      %p236 = pneg %p230
      %p237 = scmp.eq.s32.totalorder %s22, 1
      %p238 = por %p236, %p237
      %p239 = scmp.ne.s32.totalorder %s231, %s234
      %p240 = scmp.eq.s32.totalorder %s22, 0
      %p241 = por %p239, %p240
      %p242 = scmp.ne.s32.totalorder %s231, %s234
      %p243 = scmp.eq.s32.totalorder %s27, 1
      %p244 = por %p242, %p243
      %p245 = scmp.ne.s32.totalorder %s234, %s235
      %p246 = scmp.eq.s32.totalorder %s27, 0
      %p247 = por %p245, %p246
      %p248 = scmp.ne.s32.totalorder %s234, %s235
      %p249 = scmp.eq.s32.totalorder %s28, 1
      %p250 = por %p248, %p249
      %p252 = scmp.ne.s32.totalorder %s235, %s251
      %p253 = scmp.eq.s32.totalorder %s28, 0
      %p254 = por %p252, %p253
      %p255 = scmp.le.s32.totalorder 1, %s22
      %p256 = scmp.lt.s32.totalorder %s22, 3
      %p257 = pnand %p255, %p256
      %p258 = pneg %p257
      // Predicated region
      $region9: #{tpu_custom_call.1} parent=5 // pred_check
        _
      $region10: #{tpu_custom_call.1} parent=5 // pred_check_branch
        %260 = sbr.rel (%p257) target = $region12
      $region11: #{tpu_custom_call.1} parent=5 // pred_region
        %s261 = ssub.s32 %s22, 1
        // Predicated region
        $region13: #{tpu_custom_call.1} parent=11 // pred_check
          %p262 = pneg %p69
        $region14: #{tpu_custom_call.1} parent=11 // pred_check_branch
          %264 = sbr.rel (%p262) target = $region16
        $region15: #{tpu_custom_call.1} parent=11 // pred_region
          %s266 = ssub.s32 3072, 3072
          %267 = vsyncadd [#allocation4], %s266
          %s268 = sshll.u32 [#allocation3], 4
          %s269 = int_to_ptr.vmem [resolvable:$true] %s268
          %274 = dma.hbm_to_vmem [thread:$0]  %s1, 3072, %s269, [#allocation4], 64, 64, 4
        $region16: #{tpu_custom_call.1} parent=11 // pred_fallthru
          _
        // Predicated region
        $region17: #{tpu_custom_call.1} parent=11 // pred_check
          %p275 = pneg %p90
        $region18: #{tpu_custom_call.1} parent=11 // pred_check_branch
          %277 = sbr.rel (%p275) target = $region20
        $region19: #{tpu_custom_call.1} parent=11 // pred_region
          _
        $region20: #{tpu_custom_call.1} parent=11 // pred_fallthru
          _
        // Predicated region
        $region21: #{tpu_custom_call.1} parent=11 // pred_check
          %p278 = pneg %p111
        $region22: #{tpu_custom_call.1} parent=11 // pred_check_branch
          %280 = sbr.rel (%p278) target = $region24
        $region23: #{tpu_custom_call.1} parent=11 // pred_region
          %s282 = ssub.s32 3072, 3072
          %283 = vsyncadd [#allocation7], %s282
          %s284 = sshll.u32 [#allocation6], 4
          %s285 = int_to_ptr.vmem [resolvable:$true] %s284
          %290 = dma.hbm_to_vmem [thread:$0]  %s3, 3072, %s285, [#allocation7], 64, 64, 4
        $region24: #{tpu_custom_call.1} parent=11 // pred_fallthru
          _
        // Predicated region
        $region25: #{tpu_custom_call.1} parent=11 // pred_check
          %p291 = pneg %p132
        $region26: #{tpu_custom_call.1} parent=11 // pred_check_branch
          %293 = sbr.rel (%p291) target = $region28
        $region27: #{tpu_custom_call.1} parent=11 // pred_region
          _
        $region28: #{tpu_custom_call.1} parent=11 // pred_fallthru
          _
        // Predicated region
        $region29: #{tpu_custom_call.1} parent=11 // pred_check
          %p294 = pneg %p153
        $region30: #{tpu_custom_call.1} parent=11 // pred_check_branch
          %296 = sbr.rel (%p294) target = $region32
        $region31: #{tpu_custom_call.1} parent=11 // pred_region
          %s298 = ssub.s32 1024, 1024
          %299 = vsyncadd [#allocation7], %s298
          %s300 = sshll.u32 [#allocation8], 4
          %s301 = int_to_ptr.vmem [resolvable:$true] %s300
          %306 = dma.hbm_to_vmem [thread:$0]  %s5, 1024, %s301, [#allocation7], 128, 128, 8
        $region32: #{tpu_custom_call.1} parent=11 // pred_fallthru
          _
        // Predicated region
        $region33: #{tpu_custom_call.1} parent=11 // pred_check
          %p307 = pneg %p174
        $region34: #{tpu_custom_call.1} parent=11 // pred_check_branch
          %309 = sbr.rel (%p307) target = $region36
        $region35: #{tpu_custom_call.1} parent=11 // pred_region
          _
        $region36: #{tpu_custom_call.1} parent=11 // pred_fallthru
          _
        // Predicated region
        $region37: #{tpu_custom_call.1} parent=11 // pred_check
          %p310 = pneg %p195
        $region38: #{tpu_custom_call.1} parent=11 // pred_check_branch
          %312 = sbr.rel (%p310) target = $region40
        $region39: #{tpu_custom_call.1} parent=11 // pred_region
          _
        $region40: #{tpu_custom_call.1} parent=11 // pred_fallthru
          _
      $region12: #{tpu_custom_call.1} parent=5 // pred_fallthru
        _
      %p313 = scmp.lt.s32.totalorder %s22, 2
      // Predicated region
      $region41: #{tpu_custom_call.1} parent=5 // pred_check
        %p314 = pneg %p313
      $region42: #{tpu_custom_call.1} parent=5 // pred_check_branch
        %316 = sbr.rel (%p314) target = $region44
      $region43: #{tpu_custom_call.1} parent=5 // pred_region
        // Predicated region
        $region45: #{tpu_custom_call.1} parent=43 // pred_check
          %p317 = pneg %p42
        $region46: #{tpu_custom_call.1} parent=43 // pred_check_branch
          %319 = sbr.rel (%p317) target = $region48
        $region47: #{tpu_custom_call.1} parent=43 // pred_region
          %s320 = smul.u32 8, %s22
          %p321 = scmp.lt.s32.totalorder %s320, 15
          %s322 = scalar_select %p321, %s320, 15
          %s323 = smul.addr %s322, 4
          %s324 = scalar_lea.vmem %s0, %s323
          %s325 = smul.u32 8, %s22
        $region48: #{tpu_custom_call.1} parent=43 // pred_fallthru
          _
        // Predicated region
        $region49: #{tpu_custom_call.1} parent=43 // pred_check
          %p326 = pneg %p215
        $region50: #{tpu_custom_call.1} parent=43 // pred_check_branch
          %328 = sbr.rel (%p326) target = $region52
        $region51: #{tpu_custom_call.1} parent=43 // pred_region
          %p329 = scmp.lt.s32.totalorder %s22, 1
          %s330 = scalar_select %p329, %s22, 1
          %s331 = scalar_lea.vmem %s8, %s330
        $region52: #{tpu_custom_call.1} parent=43 // pred_fallthru
          _
      $region44: #{tpu_custom_call.1} parent=5 // pred_fallthru
        _
      %p332 = scmp.le.s32.totalorder 1, %s22
      %p333 = scmp.lt.s32.totalorder %s22, 3
      %p334 = pnand %p332, %p333
      %p335 = pneg %p334
      // Predicated region
      $region53: #{tpu_custom_call.1} parent=5 // pred_check
        _
      $region54: #{tpu_custom_call.1} parent=5 // pred_check_branch
        %337 = sbr.rel (%p334) target = $region56
      $region55: #{tpu_custom_call.1} parent=5 // pred_region
        %s338 = ssub.s32 %s22, 1
        // Predicated region
        $region57: #{tpu_custom_call.1} parent=55 // pred_check
          %p339 = pneg %p69
        $region58: #{tpu_custom_call.1} parent=55 // pred_check_branch
          %341 = sbr.rel (%p339) target = $region60
        $region59: #{tpu_custom_call.1} parent=55 // pred_region
          %342 = dma.done [#allocation4], 3072
        $region60: #{tpu_custom_call.1} parent=55 // pred_fallthru
          _
        // Predicated region
        $region61: #{tpu_custom_call.1} parent=55 // pred_check
          %p343 = pneg %p111
        $region62: #{tpu_custom_call.1} parent=55 // pred_check_branch
          %345 = sbr.rel (%p343) target = $region64
        $region63: #{tpu_custom_call.1} parent=55 // pred_region
          %346 = dma.done [#allocation7], 3072
        $region64: #{tpu_custom_call.1} parent=55 // pred_fallthru
          _
        // Predicated region
        $region65: #{tpu_custom_call.1} parent=55 // pred_check
          %p347 = pneg %p153
        $region66: #{tpu_custom_call.1} parent=55 // pred_check_branch
          %349 = sbr.rel (%p347) target = $region68
        $region67: #{tpu_custom_call.1} parent=55 // pred_region
          %350 = dma.done [#allocation7], 1024
        $region68: #{tpu_custom_call.1} parent=55 // pred_fallthru
          _
        %s351 = smul.u32 8, %s27
        %p352 = scmp.lt.s32.totalorder %s351, 15
        %s353 = scalar_select %p352, %s351, 15
        %s354 = smul.addr %s353, 4
        %s355 = scalar_lea.vmem %s0, %s354
        %p356 = pneg %p48
        %p357 = pneg %p45
        %p358 = pneg %p69
        %p359 = pneg %p66
        %p360 = pneg %p90
        %p361 = pneg %p87
        %p362 = pneg %p111
        %p363 = pneg %p108
        %p364 = pneg %p132
        %p365 = pneg %p129
        %p366 = pneg %p153
        %p367 = pneg %p150
        %p368 = pneg %p174
        %p369 = pneg %p171
        %p370 = pneg %p195
        %p371 = pneg %p192
        %p372 = scmp.lt.s32.totalorder %s27, 1
        %s373 = scalar_select %p372, %s27, 1
        %s374 = scalar_lea.vmem %s8, %s373
        %p375 = pneg %p221
        %p376 = pneg %p218
        %p377 = pneg %p247
        %p378 = pneg %p244
        %s379 = sand.u32 %s234, 1
        %s380 = scalar_lea.sflag [#allocation5], %s379
        %s381 = sand.u32 %s234, 1
        %s382 = scalar_lea.vmem [#allocation9], %s381
        %s383 = smul.u32 8, %s27
        %p384 = scmp.lt.s32.totalorder %s383, 15
        %s385 = scalar_select %p384, %s383, 15
        %s386 = smul.addr %s385, 4
        %s387 = scalar_lea.vmem %s0, %s386
        %s388 = smul.u32 8, %s27
        %p389 = scmp.lt.s32.totalorder %s27, 1
        %s390 = scalar_select %p389, %s27, 1
        %s391 = scalar_lea.vmem %s8, %s390
        %v393 = vld [vmem:[%s387] sm:$0xf]
        %v394 = vld [vmem:[%s387 + $0x4] sm:$0xf]
        %v395 = vld [vmem:[%s387 + $0x8] sm:$0xf]
        %v396 = vld [vmem:[%s387 + $0xc] sm:$0xf]
        %v397 = vld [vmem:[%s387 + $0x10] sm:$0xf]
        %v398 = vld [vmem:[%s387 + $0x14] sm:$0xf]
        %v399 = vld [vmem:[%s387 + $0x18] sm:$0xf]
        %v400 = vld [vmem:[%s387 + $0x1c] sm:$0x7]
        %v401 = vld [vmem:[#allocation3] sm:$0xf]
        %v402 = vld [vmem:[#allocation3 + $0x4] sm:$0xf]
        %v403 = vld [vmem:[#allocation3 + $0x8] sm:$0xf]
        %v404 = vld [vmem:[#allocation3 + $0xc] sm:$0xf]
        %v405 = vld [vmem:[#allocation3 + $0x10] sm:$0xf]
        %v406 = vld [vmem:[#allocation3 + $0x14] sm:$0xf]
        %v407 = vld [vmem:[#allocation3 + $0x18] sm:$0xf]
        %v408 = vld [vmem:[#allocation3 + $0x1c] sm:$0xf]
        %v409 = vld [vmem:[#allocation3 + $0x20] sm:$0xf]
        %v410 = vld [vmem:[#allocation3 + $0x24] sm:$0xf]
        %v411 = vld [vmem:[#allocation3 + $0x28] sm:$0xf]
        %v412 = vld [vmem:[#allocation3 + $0x2c] sm:$0xf]
        %v413 = vld [vmem:[#allocation3 + $0x30] sm:$0xf]
        %v414 = vld [vmem:[#allocation3 + $0x34] sm:$0xf]
        %v415 = vld [vmem:[#allocation3 + $0x38] sm:$0xf]
        %v416 = vld [vmem:[#allocation3 + $0x3c] sm:$0xf]
        %v417 = vld [vmem:[%s387 + $0x1c] sm:$0xf]
        %s418 = scalar_lea.vmem [#allocation3], 64
        %v419 = vld [vmem:[%s418] sm:$0xf]
        %v420 = vld [vmem:[%s418 + $0x4] sm:$0xf]
        %v421 = vld [vmem:[%s418 + $0x8] sm:$0xf]
        %v422 = vld [vmem:[%s418 + $0xc] sm:$0xf]
        %v423 = vld [vmem:[%s418 + $0x10] sm:$0xf]
        %v424 = vld [vmem:[%s418 + $0x14] sm:$0xf]
        %v425 = vld [vmem:[%s418 + $0x18] sm:$0xf]
        %v426 = vld [vmem:[%s418 + $0x1c] sm:$0xf]
        %v427 = vld [vmem:[%s418 + $0x20] sm:$0xf]
        %v428 = vld [vmem:[%s418 + $0x24] sm:$0xf]
        %v429 = vld [vmem:[%s418 + $0x28] sm:$0xf]
        %v430 = vld [vmem:[%s418 + $0x2c] sm:$0xf]
        %v431 = vld [vmem:[%s418 + $0x30] sm:$0xf]
        %v432 = vld [vmem:[%s418 + $0x34] sm:$0xf]
        %v433 = vld [vmem:[%s418 + $0x38] sm:$0xf]
        %v434 = vld [vmem:[%s418 + $0x3c] sm:$0xf]
        %v443 = vunpack.c.l.b16 %v393
        %v444 = vunpack.c.l.b16 %v394
        %v445 = vunpack.c.l.b16 %v395
        %v446 = vunpack.c.l.b16 %v396
        %v447 = vunpack.c.l.b16 %v397
        %v448 = vunpack.c.l.b16 %v398
        %v449 = vunpack.c.l.b16 %v399
        %v450 = vunpack.c.l.b16 %v417
        %v451 = vpack.c.b16 %v444, %v443
        %v452 = vpack.c.b16 %v446, %v445
        %v453 = vpack.c.b16 %v448, %v447
        %v454 = vpack.c.b16 %v450, %v449
        %vm455 = vsmask.f32 7424
        %v457 = vshrl.u32 %v451, 16
        %v459 = vshll.u32 %v451, 16
        %v461 = vrot.slane %v459, 1
        %v462 = vor.u32 %v457, %v461
        %v464 = vshll.u32 %v452, 16
        %v466 = vrot.slane %v464, 1
        %v467 = vsel %vm455, %v462, %v466
        %v468 = vshrl.u32 %v452, 16
        %v470 = vor.u32 %v468, %v466
        %v472 = vshll.u32 %v453, 16
        %v474 = vrot.slane %v472, 1
        %v475 = vsel %vm455, %v470, %v474
        %v476 = vshrl.u32 %v453, 16
        %v478 = vor.u32 %v476, %v474
        %v480 = vshll.u32 %v454, 16
        %v482 = vrot.slane %v480, 1
        %v483 = vsel %vm455, %v478, %v482
        %v484 = vshrl.u32 %v454, 16
        %v486 = vor.u32 %v484, %v482
        %v507 = vunpack.c.l.b16 %v419
        %v508 = vunpack.c.l.b16 %v420
        %v509 = vunpack.c.l.b16 %v421
        %v510 = vunpack.c.l.b16 %v422
        %v511 = vunpack.c.l.b16 %v423
        %v512 = vunpack.c.l.b16 %v424
        %v513 = vunpack.c.l.b16 %v425
        %v514 = vunpack.c.l.b16 %v426
        %v515 = vunpack.c.l.b16 %v427
        %v516 = vunpack.c.l.b16 %v428
        %v517 = vunpack.c.l.b16 %v429
        %v518 = vunpack.c.l.b16 %v430
        %v519 = vunpack.c.l.b16 %v431
        %v520 = vunpack.c.l.b16 %v432
        %v521 = vunpack.c.l.b16 %v433
        %v522 = vunpack.c.l.b16 %v434
        %v523 = vpack.c.b16 %v508, %v507
        %v524 = vpack.c.b16 %v510, %v509
        %v525 = vpack.c.b16 %v512, %v511
        %v526 = vpack.c.b16 %v514, %v513
        %v527 = vpack.c.b16 %v516, %v515
        %v528 = vpack.c.b16 %v518, %v517
        %v529 = vpack.c.b16 %v520, %v519
        %v530 = vpack.c.b16 %v522, %v521
        %539 = vmatprep.subr.bf16.mxu0 0
        %540 = vmatpush1.bf16.msra.mxu0 %v523
        %541 = vmatprep.subr.bf16.mxu0 0
        %542 = vmatpush1.bf16.msra.mxu0 %v524
        %543 = vmatprep.subr.bf16.mxu0 0
        %544 = vmatpush1.bf16.msra.mxu0 %v525
        %545 = vmatprep.subr.bf16.mxu0 0
        %546 = vmatpush1.bf16.msra.mxu0 %v526
        %547 = vmatprep.subr.bf16.mxu0 0
        %548 = vmatpush1.bf16.msra.mxu0 %v527
        %549 = vmatprep.subr.bf16.mxu0 0
        %550 = vmatpush1.bf16.msra.mxu0 %v528
        %551 = vmatprep.subr.bf16.mxu0 0
        %552 = vmatpush1.bf16.msra.mxu0 %v529
        %553 = vmatprep.subr.bf16.mxu0 0
        %554 = vmatpush1.bf16.msra.mxu0 %v530
        %555 = vmatprep.subr.bf16.mxu0 0
        %556 = vmatpush1.bf16.msra.mxu0 0
        %557 = vmatprep.subr.bf16.mxu0 0
        %558 = vmatpush1.bf16.msra.mxu0 0
        %559 = vmatprep.subr.bf16.mxu0 0
        %560 = vmatpush1.bf16.msra.mxu0 0
        %561 = vmatprep.subr.bf16.mxu0 0
        %562 = vmatpush1.bf16.msra.mxu0 0
        %563 = vmatprep.subr.bf16.mxu0 0
        %564 = vmatpush1.bf16.msra.mxu0 0
        %565 = vmatprep.subr.bf16.mxu0 0
        %566 = vmatpush1.bf16.msra.mxu0 0
        %567 = vmatprep.subr.bf16.mxu0 0
        %568 = vmatpush1.bf16.msra.mxu0 0
        %569 = vmatprep.subr.bf16.mxu0 0
        %570 = vmatpush1.bf16.msra.mxu0 0
        %571 = vmatprep.mubr.bf16.mxu0 0
        %572 = vmatmul.mubr.bf16.gmra.mrb[0].mxu0 %v467
        %v573 = vpop.f32.mrb[0].mxu0
        %v574 = vadd.f32 0.0, %v573
        %v575 = vpop.f32.mrb[0].mxu0
        %v576 = vpop.f32.mrb[0].mxu0
        %v577 = vadd.f32 0.0, %v576
        %v578 = vpop.f32.mrb[0].mxu0
        %579 = vmatprep.mubr.bf16.mxu0 0
        %580 = vmatmul.mubr.bf16.gmra.mrb[0].mxu0 %v475
        %v581 = vpop.f32.mrb[0].mxu0
        %v582 = vadd.f32 0.0, %v581
        %v583 = vpop.f32.mrb[0].mxu0
        %v584 = vpop.f32.mrb[0].mxu0
        %v585 = vadd.f32 0.0, %v584
        %v586 = vpop.f32.mrb[0].mxu0
        %587 = vmatprep.mubr.bf16.mxu0 0
        %588 = vmatmul.mubr.bf16.gmra.mrb[0].mxu0 %v483
        %v589 = vpop.f32.mrb[0].mxu0
        %v590 = vadd.f32 0.0, %v589
        %v591 = vpop.f32.mrb[0].mxu0
        %v592 = vpop.f32.mrb[0].mxu0
        %v593 = vadd.f32 0.0, %v592
        %v594 = vpop.f32.mrb[0].mxu0
        %595 = vmatprep.mubr.bf16.mxu0 0
        %596 = vmatmul.mubr.bf16.gmra.mrb[0].mxu0 %v486
        %v597 = vpop.f32.mrb[0].mxu0
        %v598 = vadd.f32 0.0, %v597
        %v599 = vpop.f32.mrb[0].mxu0
        %v600 = vpop.f32.mrb[0].mxu0
        %v601 = vadd.f32 0.0, %v600
        %v602 = vpop.f32.mrb[0].mxu0
        %603 = vdwg.mxu0
        %v605 = vunpack.c.l.b16 %v400
        %v606 = vpack.c.b16 %v605, %v449
        %v627 = vunpack.c.l.b16 %v401
        %v628 = vunpack.c.l.b16 %v402
        %v629 = vunpack.c.l.b16 %v403
        %v630 = vunpack.c.l.b16 %v404
        %v631 = vunpack.c.l.b16 %v405
        %v632 = vunpack.c.l.b16 %v406
        %v633 = vunpack.c.l.b16 %v407
        %v634 = vunpack.c.l.b16 %v408
        %v635 = vunpack.c.l.b16 %v409
        %v636 = vunpack.c.l.b16 %v410
        %v637 = vunpack.c.l.b16 %v411
        %v638 = vunpack.c.l.b16 %v412
        %v639 = vunpack.c.l.b16 %v413
        %v640 = vunpack.c.l.b16 %v414
        %v641 = vunpack.c.l.b16 %v415
        %v642 = vunpack.c.l.b16 %v416
        %v643 = vpack.c.b16 %v628, %v627
        %v644 = vpack.c.b16 %v630, %v629
        %v645 = vpack.c.b16 %v632, %v631
        %v646 = vpack.c.b16 %v634, %v633
        %v647 = vpack.c.b16 %v636, %v635
        %v648 = vpack.c.b16 %v638, %v637
        %v649 = vpack.c.b16 %v640, %v639
        %v650 = vpack.c.b16 %v642, %v641
        %659 = vmatprep.subr.bf16.mxu0 0
        %660 = vmatpush1.bf16.msra.mxu0 %v643
        %661 = vmatprep.subr.bf16.mxu0 0
        %662 = vmatpush1.bf16.msra.mxu0 %v644
        %663 = vmatprep.subr.bf16.mxu0 0
        %664 = vmatpush1.bf16.msra.mxu0 %v645
        %665 = vmatprep.subr.bf16.mxu0 0
        %666 = vmatpush1.bf16.msra.mxu0 %v646
        %667 = vmatprep.subr.bf16.mxu0 0
        %668 = vmatpush1.bf16.msra.mxu0 %v647
        %669 = vmatprep.subr.bf16.mxu0 0
        %670 = vmatpush1.bf16.msra.mxu0 %v648
        %671 = vmatprep.subr.bf16.mxu0 0
        %672 = vmatpush1.bf16.msra.mxu0 %v649
        %673 = vmatprep.subr.bf16.mxu0 0
        %674 = vmatpush1.bf16.msra.mxu0 %v650
        %675 = vmatprep.subr.bf16.mxu0 0
        %676 = vmatpush1.bf16.msra.mxu0 0
        %677 = vmatprep.subr.bf16.mxu0 0
        %678 = vmatpush1.bf16.msra.mxu0 0
        %679 = vmatprep.subr.bf16.mxu0 0
        %680 = vmatpush1.bf16.msra.mxu0 0
        %681 = vmatprep.subr.bf16.mxu0 0
        %682 = vmatpush1.bf16.msra.mxu0 0
        %683 = vmatprep.subr.bf16.mxu0 0
        %684 = vmatpush1.bf16.msra.mxu0 0
        %685 = vmatprep.subr.bf16.mxu0 0
        %686 = vmatpush1.bf16.msra.mxu0 0
        %687 = vmatprep.subr.bf16.mxu0 0
        %688 = vmatpush1.bf16.msra.mxu0 0
        %689 = vmatprep.subr.bf16.mxu0 0
        %690 = vmatpush1.bf16.msra.mxu0 0
        %691 = vmatprep.mubr.bf16.mxu0 0
        %692 = vmatmul.mubr.bf16.gmra.mrb[0].mxu0 %v451
        %v693 = vpop.f32.mrb[0].mxu0
        %v694 = vadd.f32 %v574, %v693
        %v695 = vpop.f32.mrb[0].mxu0
        %v696 = vpop.f32.mrb[0].mxu0
        %v697 = vadd.f32 %v577, %v696
        %v698 = vpop.f32.mrb[0].mxu0
        %699 = vmatprep.mubr.bf16.mxu0 0
        %700 = vmatmul.mubr.bf16.gmra.mrb[0].mxu0 %v452
        %v701 = vpop.f32.mrb[0].mxu0
        %v702 = vadd.f32 %v582, %v701
        %v703 = vpop.f32.mrb[0].mxu0
        %v704 = vpop.f32.mrb[0].mxu0
        %v705 = vadd.f32 %v585, %v704
        %v706 = vpop.f32.mrb[0].mxu0
        %707 = vmatprep.mubr.bf16.mxu0 0
        %708 = vmatmul.mubr.bf16.gmra.mrb[0].mxu0 %v453
        %v709 = vpop.f32.mrb[0].mxu0
        %v710 = vadd.f32 %v590, %v709
        %v711 = vpop.f32.mrb[0].mxu0
        %v712 = vpop.f32.mrb[0].mxu0
        %v713 = vadd.f32 %v593, %v712
        %v714 = vpop.f32.mrb[0].mxu0
        %715 = vmatprep.mubr.bf16.mxu0 0
        %716 = vmatmul.mubr.bf16.gmra.mrb[0].mxu0 %v606
        %v717 = vpop.f32.mrb[0].mxu0
        %v718 = vadd.f32 %v598, %v717
        %v719 = vpop.f32.mrb[0].mxu0
        %v720 = vpop.f32.mrb[0].mxu0
        %v721 = vadd.f32 %v601, %v720
        %v722 = vpop.f32.mrb[0].mxu0
        %723 = vdwg.mxu0
        %v724 = vld [vmem:[%s387] sm:$0xe]
        %s725 = scalar_lea.vmem [#allocation3], 128
        %v726 = vld [vmem:[%s725] sm:$0xf]
        %v727 = vld [vmem:[%s725 + $0x4] sm:$0xf]
        %v728 = vld [vmem:[%s725 + $0x8] sm:$0xf]
        %v729 = vld [vmem:[%s725 + $0xc] sm:$0xf]
        %v730 = vld [vmem:[%s725 + $0x10] sm:$0xf]
        %v731 = vld [vmem:[%s725 + $0x14] sm:$0xf]
        %v732 = vld [vmem:[%s725 + $0x18] sm:$0xf]
        %v733 = vld [vmem:[%s725 + $0x1c] sm:$0xf]
        %v734 = vld [vmem:[%s725 + $0x20] sm:$0xf]
        %v735 = vld [vmem:[%s725 + $0x24] sm:$0xf]
        %v736 = vld [vmem:[%s725 + $0x28] sm:$0xf]
        %v737 = vld [vmem:[%s725 + $0x2c] sm:$0xf]
        %v738 = vld [vmem:[%s725 + $0x30] sm:$0xf]
        %v739 = vld [vmem:[%s725 + $0x34] sm:$0xf]
        %v740 = vld [vmem:[%s725 + $0x38] sm:$0xf]
        %v741 = vld [vmem:[%s725 + $0x3c] sm:$0xf]
        %v743 = vunpack.c.l.b16 %v724
        %v744 = vpack.c.b16 %v444, %v743
        %vm745 = vcmask 1046528
        %v746 = vrot.slane %v744, 1
        %v747 = vrot.slane %v452, 1
        %v748 = vsel %vm745, %v746, %v747
        %v749 = vrot.slane %v453, 1
        %v750 = vsel %vm745, %v747, %v749
        %v751 = vrot.slane %v454, 1
        %v752 = vsel %vm745, %v749, %v751
        %v773 = vunpack.c.l.b16 %v726
        %v774 = vunpack.c.l.b16 %v727
        %v775 = vunpack.c.l.b16 %v728
        %v776 = vunpack.c.l.b16 %v729
        %v777 = vunpack.c.l.b16 %v730
        %v778 = vunpack.c.l.b16 %v731
        %v779 = vunpack.c.l.b16 %v732
        %v780 = vunpack.c.l.b16 %v733
        %v781 = vunpack.c.l.b16 %v734
        %v782 = vunpack.c.l.b16 %v735
        %v783 = vunpack.c.l.b16 %v736
        %v784 = vunpack.c.l.b16 %v737
        %v785 = vunpack.c.l.b16 %v738
        %v786 = vunpack.c.l.b16 %v739
        %v787 = vunpack.c.l.b16 %v740
        %v788 = vunpack.c.l.b16 %v741
        %v789 = vpack.c.b16 %v774, %v773
        %v790 = vpack.c.b16 %v776, %v775
        %v791 = vpack.c.b16 %v778, %v777
        %v792 = vpack.c.b16 %v780, %v779
        %v793 = vpack.c.b16 %v782, %v781
        %v794 = vpack.c.b16 %v784, %v783
        %v795 = vpack.c.b16 %v786, %v785
        %v796 = vpack.c.b16 %v788, %v787
        %805 = vmatprep.subr.bf16.mxu0 0
        %806 = vmatpush1.bf16.msra.mxu0 %v789
        %807 = vmatprep.subr.bf16.mxu0 0
        %808 = vmatpush1.bf16.msra.mxu0 %v790
        %809 = vmatprep.subr.bf16.mxu0 0
        %810 = vmatpush1.bf16.msra.mxu0 %v791
        %811 = vmatprep.subr.bf16.mxu0 0
        %812 = vmatpush1.bf16.msra.mxu0 %v792
        %813 = vmatprep.subr.bf16.mxu0 0
        %814 = vmatpush1.bf16.msra.mxu0 %v793
        %815 = vmatprep.subr.bf16.mxu0 0
        %816 = vmatpush1.bf16.msra.mxu0 %v794
        %817 = vmatprep.subr.bf16.mxu0 0
        %818 = vmatpush1.bf16.msra.mxu0 %v795
        %819 = vmatprep.subr.bf16.mxu0 0
        %820 = vmatpush1.bf16.msra.mxu0 %v796
        %821 = vmatprep.subr.bf16.mxu0 0
        %822 = vmatpush1.bf16.msra.mxu0 0
        %823 = vmatprep.subr.bf16.mxu0 0
        %824 = vmatpush1.bf16.msra.mxu0 0
        %825 = vmatprep.subr.bf16.mxu0 0
        %826 = vmatpush1.bf16.msra.mxu0 0
        %827 = vmatprep.subr.bf16.mxu0 0
        %828 = vmatpush1.bf16.msra.mxu0 0
        %829 = vmatprep.subr.bf16.mxu0 0
        %830 = vmatpush1.bf16.msra.mxu0 0
        %831 = vmatprep.subr.bf16.mxu0 0
        %832 = vmatpush1.bf16.msra.mxu0 0
        %833 = vmatprep.subr.bf16.mxu0 0
        %834 = vmatpush1.bf16.msra.mxu0 0
        %835 = vmatprep.subr.bf16.mxu0 0
        %836 = vmatpush1.bf16.msra.mxu0 0
        %837 = vmatprep.mubr.bf16.mxu0 0
        %838 = vmatmul.mubr.bf16.gmra.mrb[0].mxu0 %v748
        %v839 = vpop.f32.mrb[0].mxu0
        %v840 = vadd.f32 0.0, %v839
        %v841 = vpop.f32.mrb[0].mxu0
        %v842 = vpop.f32.mrb[0].mxu0
        %v843 = vadd.f32 0.0, %v842
        %v844 = vpop.f32.mrb[0].mxu0
        %845 = vmatprep.mubr.bf16.mxu0 0
        %846 = vmatmul.mubr.bf16.gmra.mrb[0].mxu0 %v750
        %v847 = vpop.f32.mrb[0].mxu0
        %v848 = vadd.f32 0.0, %v847
        %v849 = vpop.f32.mrb[0].mxu0
        %v850 = vpop.f32.mrb[0].mxu0
        %v851 = vadd.f32 0.0, %v850
        %v852 = vpop.f32.mrb[0].mxu0
        %853 = vmatprep.mubr.bf16.mxu0 0
        %854 = vmatmul.mubr.bf16.gmra.mrb[0].mxu0 %v752
        %v855 = vpop.f32.mrb[0].mxu0
        %v856 = vadd.f32 0.0, %v855
        %v857 = vpop.f32.mrb[0].mxu0
        %v858 = vpop.f32.mrb[0].mxu0
        %v859 = vadd.f32 0.0, %v858
        %v860 = vpop.f32.mrb[0].mxu0
        %861 = vmatprep.mubr.bf16.mxu0 0
        %862 = vmatmul.mubr.bf16.gmra.mrb[0].mxu0 %v751
        %v863 = vpop.f32.mrb[0].mxu0
        %v864 = vadd.f32 0.0, %v863
        %v865 = vpop.f32.mrb[0].mxu0
        %v866 = vpop.f32.mrb[0].mxu0
        %v867 = vadd.f32 0.0, %v866
        %v868 = vpop.f32.mrb[0].mxu0
        %869 = vdwg.mxu0
        %v870 = vadd.f32 %v694, %v840
        %v871 = vadd.f32 %v697, %v843
        %v872 = vadd.f32 %v702, %v848
        %v873 = vadd.f32 %v705, %v851
        %v874 = vadd.f32 %v710, %v856
        %v875 = vadd.f32 %v713, %v859
        %v876 = vadd.f32 %v718, %v864
        %v877 = vadd.f32 %v721, %v867
        %v878 = vld [vmem:[%s2] sm:$0x1]
        %v880 = vlaneseq
        %v881 = vshrl.u32 %v880, 7
        %v882 = vsub.s32 0, %v881
        %v883 = vrot.slane %v878, %v882
        %v885 = vadd.f32 %v870, %v883
        %v886 = vadd.f32 %v871, %v883
        %v887 = vadd.f32 %v872, %v883
        %v888 = vadd.f32 %v873, %v883
        %v889 = vadd.f32 %v874, %v883
        %v890 = vadd.f32 %v875, %v883
        %v891 = vadd.f32 %v876, %v883
        %v892 = vadd.f32 %v877, %v883
        %v893 = vmax.f32 %v885, 0.0
        %v894 = vmax.f32 %v886, 0.0
        %v895 = vmax.f32 %v887, 0.0
        %v896 = vmax.f32 %v888, 0.0
        %v897 = vmax.f32 %v889, 0.0
        %v898 = vmax.f32 %v890, 0.0
        %v899 = vmax.f32 %v891, 0.0
        %v900 = vmax.f32 %v892, 0.0
        %v901 = vmin.f32 %v893, 6.0
        %v902 = vmin.f32 %v894, 6.0
        %v903 = vmin.f32 %v895, 6.0
        %v904 = vmin.f32 %v896, 6.0
        %v905 = vmin.f32 %v897, 6.0
        %v906 = vmin.f32 %v898, 6.0
        %v907 = vmin.f32 %v899, 6.0
        %v908 = vmin.f32 %v900, 6.0
        %v909 = vpack.c.bf16 %v902, %v901
        %v910 = vpack.c.bf16 %v904, %v903
        %v911 = vpack.c.bf16 %v906, %v905
        %v912 = vpack.c.bf16 %v908, %v907
        %v913 = vld [vmem:[#allocation6] sm:$0xf]
        %v914 = vld [vmem:[#allocation6 + $0x4] sm:$0xf]
        %v915 = vld [vmem:[#allocation6 + $0x8] sm:$0xf]
        %v916 = vld [vmem:[#allocation6 + $0xc] sm:$0xf]
        %v917 = vld [vmem:[#allocation6 + $0x10] sm:$0xf]
        %v918 = vld [vmem:[#allocation6 + $0x14] sm:$0xf]
        %v919 = vld [vmem:[#allocation6 + $0x18] sm:$0xf]
        %v920 = vld [vmem:[#allocation6 + $0x1c] sm:$0xf]
        %v921 = vld [vmem:[#allocation6 + $0x20] sm:$0xf]
        %v922 = vld [vmem:[#allocation6 + $0x24] sm:$0xf]
        %v923 = vld [vmem:[#allocation6 + $0x28] sm:$0xf]
        %v924 = vld [vmem:[#allocation6 + $0x2c] sm:$0xf]
        %v925 = vld [vmem:[#allocation6 + $0x30] sm:$0xf]
        %v926 = vld [vmem:[#allocation6 + $0x34] sm:$0xf]
        %v927 = vld [vmem:[#allocation6 + $0x38] sm:$0xf]
        %v928 = vld [vmem:[#allocation6 + $0x3c] sm:$0xf]
        %s929 = scalar_lea.vmem [#allocation6], 64
        %v930 = vld [vmem:[%s929] sm:$0xf]
        %v931 = vld [vmem:[%s929 + $0x4] sm:$0xf]
        %v932 = vld [vmem:[%s929 + $0x8] sm:$0xf]
        %v933 = vld [vmem:[%s929 + $0xc] sm:$0xf]
        %v934 = vld [vmem:[%s929 + $0x10] sm:$0xf]
        %v935 = vld [vmem:[%s929 + $0x14] sm:$0xf]
        %v936 = vld [vmem:[%s929 + $0x18] sm:$0xf]
        %v937 = vld [vmem:[%s929 + $0x1c] sm:$0xf]
        %v938 = vld [vmem:[%s929 + $0x20] sm:$0xf]
        %v939 = vld [vmem:[%s929 + $0x24] sm:$0xf]
        %v940 = vld [vmem:[%s929 + $0x28] sm:$0xf]
        %v941 = vld [vmem:[%s929 + $0x2c] sm:$0xf]
        %v942 = vld [vmem:[%s929 + $0x30] sm:$0xf]
        %v943 = vld [vmem:[%s929 + $0x34] sm:$0xf]
        %v944 = vld [vmem:[%s929 + $0x38] sm:$0xf]
        %v945 = vld [vmem:[%s929 + $0x3c] sm:$0xf]
        %v947 = vshrl.u32 %v909, 16
        %v949 = vshll.u32 %v909, 16
        %v951 = vrot.slane %v949, 1
        %v952 = vor.u32 %v947, %v951
        %v954 = vshll.u32 %v910, 16
        %v956 = vrot.slane %v954, 1
        %v957 = vsel %vm455, %v952, %v956
        %v958 = vshrl.u32 %v910, 16
        %v960 = vor.u32 %v958, %v956
        %v962 = vshll.u32 %v911, 16
        %v964 = vrot.slane %v962, 1
        %v965 = vsel %vm455, %v960, %v964
        %v966 = vshrl.u32 %v911, 16
        %v968 = vor.u32 %v966, %v964
        %v970 = vshll.u32 %v912, 16
        %v972 = vrot.slane %v970, 1
        %v973 = vsel %vm455, %v968, %v972
        %v974 = vshrl.u32 %v912, 16
        %v976 = vor.u32 %v974, %v972
        %v997 = vunpack.c.l.b16 %v930
        %v998 = vunpack.c.l.b16 %v931
        %v999 = vunpack.c.l.b16 %v932
        %v1000 = vunpack.c.l.b16 %v933
        %v1001 = vunpack.c.l.b16 %v934
        %v1002 = vunpack.c.l.b16 %v935
        %v1003 = vunpack.c.l.b16 %v936
        %v1004 = vunpack.c.l.b16 %v937
        %v1005 = vunpack.c.l.b16 %v938
        %v1006 = vunpack.c.l.b16 %v939
        %v1007 = vunpack.c.l.b16 %v940
        %v1008 = vunpack.c.l.b16 %v941
        %v1009 = vunpack.c.l.b16 %v942
        %v1010 = vunpack.c.l.b16 %v943
        %v1011 = vunpack.c.l.b16 %v944
        %v1012 = vunpack.c.l.b16 %v945
        %v1013 = vpack.c.b16 %v998, %v997
        %v1014 = vpack.c.b16 %v1000, %v999
        %v1015 = vpack.c.b16 %v1002, %v1001
        %v1016 = vpack.c.b16 %v1004, %v1003
        %v1017 = vpack.c.b16 %v1006, %v1005
        %v1018 = vpack.c.b16 %v1008, %v1007
        %v1019 = vpack.c.b16 %v1010, %v1009
        %v1020 = vpack.c.b16 %v1012, %v1011
        %1029 = vmatprep.subr.bf16.mxu0 0
        %1030 = vmatpush1.bf16.msra.mxu0 %v1013
        %1031 = vmatprep.subr.bf16.mxu0 0
        %1032 = vmatpush1.bf16.msra.mxu0 %v1014
        %1033 = vmatprep.subr.bf16.mxu0 0
        %1034 = vmatpush1.bf16.msra.mxu0 %v1015
        %1035 = vmatprep.subr.bf16.mxu0 0
        %1036 = vmatpush1.bf16.msra.mxu0 %v1016
        %1037 = vmatprep.subr.bf16.mxu0 0
        %1038 = vmatpush1.bf16.msra.mxu0 %v1017
        %1039 = vmatprep.subr.bf16.mxu0 0
        %1040 = vmatpush1.bf16.msra.mxu0 %v1018
        %1041 = vmatprep.subr.bf16.mxu0 0
        %1042 = vmatpush1.bf16.msra.mxu0 %v1019
        %1043 = vmatprep.subr.bf16.mxu0 0
        %1044 = vmatpush1.bf16.msra.mxu0 %v1020
        %1045 = vmatprep.subr.bf16.mxu0 0
        %1046 = vmatpush1.bf16.msra.mxu0 0
        %1047 = vmatprep.subr.bf16.mxu0 0
        %1048 = vmatpush1.bf16.msra.mxu0 0
        %1049 = vmatprep.subr.bf16.mxu0 0
        %1050 = vmatpush1.bf16.msra.mxu0 0
        %1051 = vmatprep.subr.bf16.mxu0 0
        %1052 = vmatpush1.bf16.msra.mxu0 0
        %1053 = vmatprep.subr.bf16.mxu0 0
        %1054 = vmatpush1.bf16.msra.mxu0 0
        %1055 = vmatprep.subr.bf16.mxu0 0
        %1056 = vmatpush1.bf16.msra.mxu0 0
        %1057 = vmatprep.subr.bf16.mxu0 0
        %1058 = vmatpush1.bf16.msra.mxu0 0
        %1059 = vmatprep.subr.bf16.mxu0 0
        %1060 = vmatpush1.bf16.msra.mxu0 0
        %1061 = vmatprep.mubr.bf16.mxu0 0
        %1062 = vmatmul.mubr.bf16.gmra.mrb[0].mxu0 %v957
        %v1063 = vpop.f32.mrb[0].mxu0
        %v1064 = vadd.f32 0.0, %v1063
        %v1065 = vpop.f32.mrb[0].mxu0
        %v1066 = vpop.f32.mrb[0].mxu0
        %v1067 = vadd.f32 0.0, %v1066
        %v1068 = vpop.f32.mrb[0].mxu0
        %1069 = vmatprep.mubr.bf16.mxu0 0
        %1070 = vmatmul.mubr.bf16.gmra.mrb[0].mxu0 %v965
        %v1071 = vpop.f32.mrb[0].mxu0
        %v1072 = vadd.f32 0.0, %v1071
        %v1073 = vpop.f32.mrb[0].mxu0
        %v1074 = vpop.f32.mrb[0].mxu0
        %v1075 = vadd.f32 0.0, %v1074
        %v1076 = vpop.f32.mrb[0].mxu0
        %1077 = vmatprep.mubr.bf16.mxu0 0
        %1078 = vmatmul.mubr.bf16.gmra.mrb[0].mxu0 %v973
        %v1079 = vpop.f32.mrb[0].mxu0
        %v1080 = vadd.f32 0.0, %v1079
        %v1081 = vpop.f32.mrb[0].mxu0
        %v1082 = vpop.f32.mrb[0].mxu0
        %v1083 = vadd.f32 0.0, %v1082
        %v1084 = vpop.f32.mrb[0].mxu0
        %1085 = vmatprep.mubr.bf16.mxu0 0
        %1086 = vmatmul.mubr.bf16.gmra.mrb[0].mxu0 %v976
        %v1087 = vpop.f32.mrb[0].mxu0
        %v1088 = vadd.f32 0.0, %v1087
        %v1089 = vpop.f32.mrb[0].mxu0
        %v1090 = vpop.f32.mrb[0].mxu0
        %v1091 = vadd.f32 0.0, %v1090
        %v1092 = vpop.f32.mrb[0].mxu0
        %1093 = vdwg.mxu0
        %v1110 = vunpack.c.l.b16 %v913
        %v1111 = vunpack.c.l.b16 %v914
        %v1112 = vunpack.c.l.b16 %v915
        %v1113 = vunpack.c.l.b16 %v916
        %v1114 = vunpack.c.l.b16 %v917
        %v1115 = vunpack.c.l.b16 %v918
        %v1116 = vunpack.c.l.b16 %v919
        %v1117 = vunpack.c.l.b16 %v920
        %v1118 = vunpack.c.l.b16 %v921
        %v1119 = vunpack.c.l.b16 %v922
        %v1120 = vunpack.c.l.b16 %v923
        %v1121 = vunpack.c.l.b16 %v924
        %v1122 = vunpack.c.l.b16 %v925
        %v1123 = vunpack.c.l.b16 %v926
        %v1124 = vunpack.c.l.b16 %v927
        %v1125 = vunpack.c.l.b16 %v928
        %v1126 = vpack.c.b16 %v1111, %v1110
        %v1127 = vpack.c.b16 %v1113, %v1112
        %v1128 = vpack.c.b16 %v1115, %v1114
        %v1129 = vpack.c.b16 %v1117, %v1116
        %v1130 = vpack.c.b16 %v1119, %v1118
        %v1131 = vpack.c.b16 %v1121, %v1120
        %v1132 = vpack.c.b16 %v1123, %v1122
        %v1133 = vpack.c.b16 %v1125, %v1124
        %1142 = vmatprep.subr.bf16.mxu0 0
        %1143 = vmatpush1.bf16.msra.mxu0 %v1126
        %1144 = vmatprep.subr.bf16.mxu0 0
        %1145 = vmatpush1.bf16.msra.mxu0 %v1127
        %1146 = vmatprep.subr.bf16.mxu0 0
        %1147 = vmatpush1.bf16.msra.mxu0 %v1128
        %1148 = vmatprep.subr.bf16.mxu0 0
        %1149 = vmatpush1.bf16.msra.mxu0 %v1129
        %1150 = vmatprep.subr.bf16.mxu0 0
        %1151 = vmatpush1.bf16.msra.mxu0 %v1130
        %1152 = vmatprep.subr.bf16.mxu0 0
        %1153 = vmatpush1.bf16.msra.mxu0 %v1131
        %1154 = vmatprep.subr.bf16.mxu0 0
        %1155 = vmatpush1.bf16.msra.mxu0 %v1132
        %1156 = vmatprep.subr.bf16.mxu0 0
        %1157 = vmatpush1.bf16.msra.mxu0 %v1133
        %1158 = vmatprep.subr.bf16.mxu0 0
        %1159 = vmatpush1.bf16.msra.mxu0 0
        %1160 = vmatprep.subr.bf16.mxu0 0
        %1161 = vmatpush1.bf16.msra.mxu0 0
        %1162 = vmatprep.subr.bf16.mxu0 0
        %1163 = vmatpush1.bf16.msra.mxu0 0
        %1164 = vmatprep.subr.bf16.mxu0 0
        %1165 = vmatpush1.bf16.msra.mxu0 0
        %1166 = vmatprep.subr.bf16.mxu0 0
        %1167 = vmatpush1.bf16.msra.mxu0 0
        %1168 = vmatprep.subr.bf16.mxu0 0
        %1169 = vmatpush1.bf16.msra.mxu0 0
        %1170 = vmatprep.subr.bf16.mxu0 0
        %1171 = vmatpush1.bf16.msra.mxu0 0
        %1172 = vmatprep.subr.bf16.mxu0 0
        %1173 = vmatpush1.bf16.msra.mxu0 0
        %1174 = vmatprep.mubr.bf16.mxu0 0
        %1175 = vmatmul.mubr.bf16.gmra.mrb[0].mxu0 %v909
        %v1176 = vpop.f32.mrb[0].mxu0
        %v1177 = vadd.f32 %v1064, %v1176
        %v1178 = vpop.f32.mrb[0].mxu0
        %v1179 = vpop.f32.mrb[0].mxu0
        %v1180 = vadd.f32 %v1067, %v1179
        %v1181 = vpop.f32.mrb[0].mxu0
        %1182 = vmatprep.mubr.bf16.mxu0 0
        %1183 = vmatmul.mubr.bf16.gmra.mrb[0].mxu0 %v910
        %v1184 = vpop.f32.mrb[0].mxu0
        %v1185 = vadd.f32 %v1072, %v1184
        %v1186 = vpop.f32.mrb[0].mxu0
        %v1187 = vpop.f32.mrb[0].mxu0
        %v1188 = vadd.f32 %v1075, %v1187
        %v1189 = vpop.f32.mrb[0].mxu0
        %1190 = vmatprep.mubr.bf16.mxu0 0
        %1191 = vmatmul.mubr.bf16.gmra.mrb[0].mxu0 %v911
        %v1192 = vpop.f32.mrb[0].mxu0
        %v1193 = vadd.f32 %v1080, %v1192
        %v1194 = vpop.f32.mrb[0].mxu0
        %v1195 = vpop.f32.mrb[0].mxu0
        %v1196 = vadd.f32 %v1083, %v1195
        %v1197 = vpop.f32.mrb[0].mxu0
        %1198 = vmatprep.mubr.bf16.mxu0 0
        %1199 = vmatmul.mubr.bf16.gmra.mrb[0].mxu0 %v912
        %v1200 = vpop.f32.mrb[0].mxu0
        %v1201 = vadd.f32 %v1088, %v1200
        %v1202 = vpop.f32.mrb[0].mxu0
        %v1203 = vpop.f32.mrb[0].mxu0
        %v1204 = vadd.f32 %v1091, %v1203
        %v1205 = vpop.f32.mrb[0].mxu0
        %1206 = vdwg.mxu0
        %s1207 = scalar_lea.vmem [#allocation6], 128
        %v1208 = vld [vmem:[%s1207] sm:$0xf]
        %v1209 = vld [vmem:[%s1207 + $0x4] sm:$0xf]
        %v1210 = vld [vmem:[%s1207 + $0x8] sm:$0xf]
        %v1211 = vld [vmem:[%s1207 + $0xc] sm:$0xf]
        %v1212 = vld [vmem:[%s1207 + $0x10] sm:$0xf]
        %v1213 = vld [vmem:[%s1207 + $0x14] sm:$0xf]
        %v1214 = vld [vmem:[%s1207 + $0x18] sm:$0xf]
        %v1215 = vld [vmem:[%s1207 + $0x1c] sm:$0xf]
        %v1216 = vld [vmem:[%s1207 + $0x20] sm:$0xf]
        %v1217 = vld [vmem:[%s1207 + $0x24] sm:$0xf]
        %v1218 = vld [vmem:[%s1207 + $0x28] sm:$0xf]
        %v1219 = vld [vmem:[%s1207 + $0x2c] sm:$0xf]
        %v1220 = vld [vmem:[%s1207 + $0x30] sm:$0xf]
        %v1221 = vld [vmem:[%s1207 + $0x34] sm:$0xf]
        %v1222 = vld [vmem:[%s1207 + $0x38] sm:$0xf]
        %v1223 = vld [vmem:[%s1207 + $0x3c] sm:$0xf]
        %v1228 = vrot.slane %v909, 1
        %v1229 = vrot.slane %v910, 1
        %v1230 = vsel %vm745, %v1228, %v1229
        %v1231 = vrot.slane %v911, 1
        %v1232 = vsel %vm745, %v1229, %v1231
        %v1233 = vrot.slane %v912, 1
        %v1234 = vsel %vm745, %v1231, %v1233
        %v1255 = vunpack.c.l.b16 %v1208
        %v1256 = vunpack.c.l.b16 %v1209
        %v1257 = vunpack.c.l.b16 %v1210
        %v1258 = vunpack.c.l.b16 %v1211
        %v1259 = vunpack.c.l.b16 %v1212
        %v1260 = vunpack.c.l.b16 %v1213
        %v1261 = vunpack.c.l.b16 %v1214
        %v1262 = vunpack.c.l.b16 %v1215
        %v1263 = vunpack.c.l.b16 %v1216
        %v1264 = vunpack.c.l.b16 %v1217
        %v1265 = vunpack.c.l.b16 %v1218
        %v1266 = vunpack.c.l.b16 %v1219
        %v1267 = vunpack.c.l.b16 %v1220
        %v1268 = vunpack.c.l.b16 %v1221
        %v1269 = vunpack.c.l.b16 %v1222
        %v1270 = vunpack.c.l.b16 %v1223
        %v1271 = vpack.c.b16 %v1256, %v1255
        %v1272 = vpack.c.b16 %v1258, %v1257
        %v1273 = vpack.c.b16 %v1260, %v1259
        %v1274 = vpack.c.b16 %v1262, %v1261
        %v1275 = vpack.c.b16 %v1264, %v1263
        %v1276 = vpack.c.b16 %v1266, %v1265
        %v1277 = vpack.c.b16 %v1268, %v1267
        %v1278 = vpack.c.b16 %v1270, %v1269
        %1287 = vmatprep.subr.bf16.mxu0 0
        %1288 = vmatpush1.bf16.msra.mxu0 %v1271
        %1289 = vmatprep.subr.bf16.mxu0 0
        %1290 = vmatpush1.bf16.msra.mxu0 %v1272
        %1291 = vmatprep.subr.bf16.mxu0 0
        %1292 = vmatpush1.bf16.msra.mxu0 %v1273
        %1293 = vmatprep.subr.bf16.mxu0 0
        %1294 = vmatpush1.bf16.msra.mxu0 %v1274
        %1295 = vmatprep.subr.bf16.mxu0 0
        %1296 = vmatpush1.bf16.msra.mxu0 %v1275
        %1297 = vmatprep.subr.bf16.mxu0 0
        %1298 = vmatpush1.bf16.msra.mxu0 %v1276
        %1299 = vmatprep.subr.bf16.mxu0 0
        %1300 = vmatpush1.bf16.msra.mxu0 %v1277
        %1301 = vmatprep.subr.bf16.mxu0 0
        %1302 = vmatpush1.bf16.msra.mxu0 %v1278
        %1303 = vmatprep.subr.bf16.mxu0 0
        %1304 = vmatpush1.bf16.msra.mxu0 0
        %1305 = vmatprep.subr.bf16.mxu0 0
        %1306 = vmatpush1.bf16.msra.mxu0 0
        %1307 = vmatprep.subr.bf16.mxu0 0
        %1308 = vmatpush1.bf16.msra.mxu0 0
        %1309 = vmatprep.subr.bf16.mxu0 0
        %1310 = vmatpush1.bf16.msra.mxu0 0
        %1311 = vmatprep.subr.bf16.mxu0 0
        %1312 = vmatpush1.bf16.msra.mxu0 0
        %1313 = vmatprep.subr.bf16.mxu0 0
        %1314 = vmatpush1.bf16.msra.mxu0 0
        %1315 = vmatprep.subr.bf16.mxu0 0
        %1316 = vmatpush1.bf16.msra.mxu0 0
        %1317 = vmatprep.subr.bf16.mxu0 0
        %1318 = vmatpush1.bf16.msra.mxu0 0
        %1319 = vmatprep.mubr.bf16.mxu0 0
        %1320 = vmatmul.mubr.bf16.gmra.mrb[0].mxu0 %v1230
        %v1321 = vpop.f32.mrb[0].mxu0
        %v1322 = vadd.f32 0.0, %v1321
        %v1323 = vpop.f32.mrb[0].mxu0
        %v1324 = vpop.f32.mrb[0].mxu0
        %v1325 = vadd.f32 0.0, %v1324
        %v1326 = vpop.f32.mrb[0].mxu0
        %1327 = vmatprep.mubr.bf16.mxu0 0
        %1328 = vmatmul.mubr.bf16.gmra.mrb[0].mxu0 %v1232
        %v1329 = vpop.f32.mrb[0].mxu0
        %v1330 = vadd.f32 0.0, %v1329
        %v1331 = vpop.f32.mrb[0].mxu0
        %v1332 = vpop.f32.mrb[0].mxu0
        %v1333 = vadd.f32 0.0, %v1332
        %v1334 = vpop.f32.mrb[0].mxu0
        %1335 = vmatprep.mubr.bf16.mxu0 0
        %1336 = vmatmul.mubr.bf16.gmra.mrb[0].mxu0 %v1234
        %v1337 = vpop.f32.mrb[0].mxu0
        %v1338 = vadd.f32 0.0, %v1337
        %v1339 = vpop.f32.mrb[0].mxu0
        %v1340 = vpop.f32.mrb[0].mxu0
        %v1341 = vadd.f32 0.0, %v1340
        %v1342 = vpop.f32.mrb[0].mxu0
        %1343 = vmatprep.mubr.bf16.mxu0 0
        %1344 = vmatmul.mubr.bf16.gmra.mrb[0].mxu0 %v1233
        %v1345 = vpop.f32.mrb[0].mxu0
        %v1346 = vadd.f32 0.0, %v1345
        %v1347 = vpop.f32.mrb[0].mxu0
        %v1348 = vpop.f32.mrb[0].mxu0
        %v1349 = vadd.f32 0.0, %v1348
        %v1350 = vpop.f32.mrb[0].mxu0
        %1351 = vdwg.mxu0
        %v1352 = vadd.f32 %v1177, %v1322
        %v1353 = vadd.f32 %v1180, %v1325
        %v1354 = vadd.f32 %v1185, %v1330
        %v1355 = vadd.f32 %v1188, %v1333
        %v1356 = vadd.f32 %v1193, %v1338
        %v1357 = vadd.f32 %v1196, %v1341
        %v1358 = vadd.f32 %v1201, %v1346
        %v1359 = vadd.f32 %v1204, %v1349
        %v1360 = vld [vmem:[%s4] sm:$0x1]
        %v1362 = vlaneseq
        %v1363 = vshrl.u32 %v1362, 7
        %v1364 = vsub.s32 0, %v1363
        %v1365 = vrot.slane %v1360, %v1364
        %v1367 = vadd.f32 %v1352, %v1365
        %v1368 = vadd.f32 %v1353, %v1365
        %v1369 = vadd.f32 %v1354, %v1365
        %v1370 = vadd.f32 %v1355, %v1365
        %v1371 = vadd.f32 %v1356, %v1365
        %v1372 = vadd.f32 %v1357, %v1365
        %v1373 = vadd.f32 %v1358, %v1365
        %v1374 = vadd.f32 %v1359, %v1365
        %v1375 = vmax.f32 %v1367, 0.0
        %v1376 = vmax.f32 %v1368, 0.0
        %v1377 = vmax.f32 %v1369, 0.0
        %v1378 = vmax.f32 %v1370, 0.0
        %v1379 = vmax.f32 %v1371, 0.0
        %v1380 = vmax.f32 %v1372, 0.0
        %v1381 = vmax.f32 %v1373, 0.0
        %v1382 = vmax.f32 %v1374, 0.0
        %v1383 = vmin.f32 %v1375, 6.0
        %v1384 = vmin.f32 %v1376, 6.0
        %v1385 = vmin.f32 %v1377, 6.0
        %v1386 = vmin.f32 %v1378, 6.0
        %v1387 = vmin.f32 %v1379, 6.0
        %v1388 = vmin.f32 %v1380, 6.0
        %v1389 = vmin.f32 %v1381, 6.0
        %v1390 = vmin.f32 %v1382, 6.0
        %v1391 = vld [vmem:[#allocation8] sm:$0xff]
        %v1392 = vld [vmem:[#allocation8 + $0x8] sm:$0xff]
        %v1393 = vld [vmem:[#allocation8 + $0x10] sm:$0xff]
        %v1394 = vld [vmem:[#allocation8 + $0x18] sm:$0xff]
        %v1395 = vld [vmem:[#allocation8 + $0x20] sm:$0xff]
        %v1396 = vld [vmem:[#allocation8 + $0x28] sm:$0xff]
        %v1397 = vld [vmem:[#allocation8 + $0x30] sm:$0xff]
        %v1398 = vld [vmem:[#allocation8 + $0x38] sm:$0xf]
        %v1399 = vmul.f32 %v1383, %v1391
        %v1400 = vmul.f32 %v1384, %v1392
        %v1401 = vmul.f32 %v1385, %v1393
        %v1402 = vmul.f32 %v1386, %v1394
        %v1403 = vmul.f32 %v1387, %v1395
        %v1404 = vmul.f32 %v1388, %v1396
        %v1405 = vmul.f32 %v1389, %v1397
        %v1406 = vmul.f32 %v1390, %v1398
        %1407 = vadd.xlane.f32.xlu0 %v1399
        %v1408 = vpop.xlane.xlu0 %1407
        %1409 = vadd.xlane.f32.xlu0 %v1400
        %v1410 = vpop.xlane.xlu0 %1409
        %1411 = vadd.xlane.f32.xlu0 %v1401
        %v1412 = vpop.xlane.xlu0 %1411
        %1413 = vadd.xlane.f32.xlu0 %v1402
        %v1414 = vpop.xlane.xlu0 %1413
        %1415 = vadd.xlane.f32.xlu0 %v1403
        %v1416 = vpop.xlane.xlu0 %1415
        %1417 = vadd.xlane.f32.xlu0 %v1404
        %v1418 = vpop.xlane.xlu0 %1417
        %1419 = vadd.xlane.f32.xlu0 %v1405
        %v1420 = vpop.xlane.xlu0 %1419
        %vm1421 = vcmask 1043456
        %v1422 = vsel %vm1421, %v1406, 0.0
        %1423 = vadd.xlane.f32.xlu0 %v1422
        %v1424 = vpop.xlane.xlu0 %1423
        %v1425 = vld [vmem:[%s6] sm:$0xff]
        %v1426 = vld [vmem:[%s6 + $0x8] sm:$0xff]
        %v1427 = vld [vmem:[%s6 + $0x10] sm:$0xff]
        %v1428 = vld [vmem:[%s6 + $0x18] sm:$0xff]
        %v1429 = vld [vmem:[%s6 + $0x20] sm:$0xff]
        %v1430 = vld [vmem:[%s6 + $0x28] sm:$0xff]
        %v1431 = vld [vmem:[%s6 + $0x30] sm:$0xff]
        %v1432 = vld [vmem:[%s6 + $0x38] sm:$0xf]
        %v1433 = vmul.f32 %v1408, %v1425
        %v1434 = vmul.f32 %v1410, %v1426
        %v1435 = vmul.f32 %v1412, %v1427
        %v1436 = vmul.f32 %v1414, %v1428
        %v1437 = vmul.f32 %v1416, %v1429
        %v1438 = vmul.f32 %v1418, %v1430
        %v1439 = vmul.f32 %v1420, %v1431
        %v1440 = vmul.f32 %v1424, %v1432
        %vm1441 = vcmask 31744
        %v1442 = vsel %vm1441, %v1433, 0.0
        %v1443 = vsel %vm1441, %v1434, 0.0
        %v1444 = vadd.f32 %v1442, %v1443
        %v1445 = vsel %vm1441, %v1435, 0.0
        %v1446 = vadd.f32 %v1444, %v1445
        %v1447 = vsel %vm1441, %v1436, 0.0
        %v1448 = vadd.f32 %v1446, %v1447
        %v1449 = vsel %vm1441, %v1437, 0.0
        %v1450 = vadd.f32 %v1448, %v1449
        %v1451 = vsel %vm1441, %v1438, 0.0
        %v1452 = vadd.f32 %v1450, %v1451
        %v1453 = vsel %vm1441, %v1439, 0.0
        %v1454 = vadd.f32 %v1452, %v1453
        %vm1455 = vcmask 27648
        %v1456 = vsel %vm1455, %v1440, 0.0
        %v1457 = vadd.f32 %v1454, %v1456
        %v1458 = vrot.slane %v1457, 4
        %v1459 = vadd.f32 %v1457, %v1458
        %v1460 = vrot.slane %v1459, 2
        %v1461 = vadd.f32 %v1459, %v1460
        %v1462 = vrot.slane %v1461, 1
        %v1463 = vadd.f32 %v1461, %v1462
        %v1464 = vld [vmem:[#allocation2] sm:$0x1]
        %1466 = vset.pattern.permute.xlu0 0
        %1467 = vperm.xlu0 %1466, %v1464
        %v1468 = vpop.permute.xlu0 %1467
        %v1470 = vlaneseq
        %v1471 = vshrl.u32 %v1470, 7
        %v1472 = vsub.s32 0, %v1471
        %v1473 = vrot.slane %v1468, %v1472
        %v1474 = vadd.f32 %v1463, %v1473
        %v1475 = vld [vmem:[%s391] sm:$0x1]
        %v1476 = vadd.f32 %v1474, %v1475
        %vm1477 = vcmask 24576
        %v1478 = vsel %vm1477, %v1476, -inf
        %1479 = vmax.xlane.f32.xlu0 %v1478
        %v1480 = vpop.xlane.xlu0 %1479
        %v1481 = vsub.f32 %v1476, %v1480
        %v1482 = vmul.f32 %v1481, 1.442695
        %v1483 = vpow.pop %v1482
        %v1484 = vsel %vm1477, %v1483, 0.0
        %1485 = vadd.xlane.f32.xlu0 %v1484
        %v1486 = vpop.xlane.xlu0 %1485
        %v1487 = vrcp.pop %v1486
        %v1488 = vmul.f32 %v1483, %v1487
        %1489 = vst.msk [vmem:[%s382] sm:$0x1] %vm1477, %v1488
        %s1490 = sand.u32 %s234, 1
        %s1491 = scalar_lea.sflag [#allocation5], %s1490
        %s1492 = sand.u32 %s234, 1
        %s1493 = scalar_lea.vmem [#allocation9], %s1492
        // Predicated region
        $region69: #{tpu_custom_call.1} parent=55 // pred_check
          %p1494 = pneg %p244
        $region70: #{tpu_custom_call.1} parent=55 // pred_check_branch
          %1496 = sbr.rel (%p1494) target = $region72
        $region71: #{tpu_custom_call.1} parent=55 // pred_region
          %s1498 = ssub.s32 16, 16
          %1499 = vsyncadd %s1491, %s1498
          %s1500 = smul.addr %s27, 16
          %s1501 = scalar_lea.hbm %s9, %s1500
          %s1503 = sshll.u32 %s1493, 4
          %s1504 = int_to_ptr.vmem [resolvable:$true] %s1503
          %1506 = dma.vmem_to_hbm [thread:$0]  %s1504, 16, %s1501, %s1491
        $region72: #{tpu_custom_call.1} parent=55 // pred_fallthru
          _
      $region56: #{tpu_custom_call.1} parent=5 // pred_fallthru
        _
      %p1507 = scmp.le.s32.totalorder 2, %s22
      // Predicated region
      $region73: #{tpu_custom_call.1} parent=5 // pred_check
        %p1508 = pneg %p1507
      $region74: #{tpu_custom_call.1} parent=5 // pred_check_branch
        %1510 = sbr.rel (%p1508) target = $region76
      $region75: #{tpu_custom_call.1} parent=5 // pred_region
        %s1511 = ssub.s32 %s22, 2
        // Predicated region
        $region77: #{tpu_custom_call.1} parent=75 // pred_check
          %p1512 = pneg %p250
        $region78: #{tpu_custom_call.1} parent=75 // pred_check_branch
          %1514 = sbr.rel (%p1512) target = $region80
        $region79: #{tpu_custom_call.1} parent=75 // pred_region
          %s1515 = sand.u32 %s235, 1
          %s1516 = scalar_lea.sflag [#allocation5], %s1515
          %s1517 = sand.u32 %s235, 1
          %s1518 = scalar_lea.vmem [#allocation9], %s1517
          %1519 = dma.done %s1516, 16
        $region80: #{tpu_custom_call.1} parent=75 // pred_fallthru
          _
      $region76: #{tpu_custom_call.1} parent=5 // pred_fallthru
        _
    $region6: #{tpu_custom_call.1} parent=1 // loop_footer
      %s26 = sadd.s32 1, %s22
    $region7: #{tpu_custom_call.1} parent=1 // loop_footer_branch
      %21 = sbr.rel target = $region3
    $region8: #{tpu_custom_call.1} parent=1 // loop_exit
      _
    %1520 = vsyncpa [#allocation4], 1
    %s1521 = scalar_lea.sflag [#allocation4], 1
    %1522 = vsyncpa %s1521, 1
    %1523 = vsyncpa [#allocation7], 1
    %1524 = vsyncpa [#allocation5], 1
    %s1525 = scalar_lea.sflag [#allocation5], 1
    %1526 = vsyncpa %s1525, 1

</llo_original>
